<compile_context>
chip_gen: v7x
topology: tpu7x:2x2x1
jax: 0.10.0
libtpu: 0.0.40
codegen_flags: <defaults>
</compile_context>

<pallas_src>
import functools
import math

import jax
import jax.numpy as jnp
from jax.experimental import pallas as pl
from jax.experimental.pallas import tpu as pltpu

MATMUL_DTYPE = jnp.bfloat16      # matmul operand / layer-boundary activation dtype
LN_EPS = 1e-12                   # BERT LayerNorm eps
LANE = 128

VMEM_SPEC = pl.BlockSpec(memory_space=pltpu.MemorySpace.VMEM)


def _tpu_generation():
    try:
        kind = jax.devices()[0].device_kind.lower()
    except Exception:
        return 0
    for g in (7, 6, 5, 4):
        if f"v{g}" in kind:
            return g
    return 0


_GEN = _tpu_generation()
if _GEN in (5, 6):                       # 128 MiB physical VMEM
    TM = 512
    VMEM_LIMIT = 96 * 1024 * 1024
else:                                    # v7x (64 MiB) or unknown: conservative
    TM = 256
    VMEM_LIMIT = 48 * 1024 * 1024


def _compiler_params(n_grid_axes):
    return pltpu.CompilerParams(
        dimension_semantics=("parallel",) * n_grid_axes,
        vmem_limit_bytes=VMEM_LIMIT)


def _m_tile(M):
    return M if M <= TM else TM


def _round_up(n, m):
    return ((n + m - 1) // m) * m


# ---------------------------------------------------------------------------
# Fused attention block:  LN1(x + (softmax(QK^T + mask) V) @ wo + bo)
# ---------------------------------------------------------------------------
def _attn_block_kernel(x_ref, m_ref, wqkv_ref, bqkv_ref, wo_ref, bo_ref,
                       g_ref, bt_ref, o_ref, *, num_heads, D, scale):
    H = num_heads * D
    x = x_ref[...]                                        # (S, H) bf16
    S = x.shape[0]
    mask = m_ref[0]                                       # (1, S) additive key mask, f32

    # Fused QKV projection — q/k/v live only in VMEM/vregs.
    qkv = jnp.dot(x.astype(wqkv_ref.dtype), wqkv_ref[...],
                  preferred_element_type=jnp.float32) + bqkv_ref[...]
    qkv = qkv.astype(MATMUL_DTYPE)                        # (S, 3H)

    attn = jnp.zeros((S, H), jnp.float32)
    for h in range(num_heads):                            # static unroll over heads
        lo = h * D
        qh = qkv[:, lo:lo + D]                            # (S, D) bf16
        kh = qkv[:, H + lo:H + lo + D]
        vh = qkv[:, 2 * H + lo:2 * H + lo + D]
        s = jax.lax.dot_general(qh, kh, (((1,), (1,)), ((), ())),
                                preferred_element_type=jnp.float32)   # q @ k^T, f32
        s = s * scale + mask
        s_max = jnp.max(s, axis=-1, keepdims=True)
        p = jnp.exp(s - s_max)
        denom = jnp.sum(p, axis=-1, keepdims=True)
        p = p * pl.reciprocal(denom, approx=True)         # EUP slot, frees VALU
        ctx_h = jnp.dot(p.astype(MATMUL_DTYPE), vh,
                        preferred_element_type=jnp.float32)           # (S, D)
        # Accumulate this head's output projection; ctx never round-trips HBM
        # and no cross-lane concatenate of per-head contexts is needed.
        attn = attn + jnp.dot(ctx_h.astype(wo_ref.dtype), wo_ref[lo:lo + D, :],
                              preferred_element_type=jnp.float32)

    y = attn + bo_ref[...] + x.astype(jnp.float32)        # bias + residual
    mu = jnp.mean(y, axis=-1, keepdims=True)
    var = jnp.mean(jnp.square(y - mu), axis=-1, keepdims=True)
    y = (y - mu) * jax.lax.rsqrt(var + LN_EPS)
    o_ref[...] = (y * g_ref[...] + bt_ref[...]).astype(o_ref.dtype)


def attention_block(h, add_mask, w_qkv, b_qkv, wo, bo, ln_g, ln_b,
                    *, batch, seq, num_heads, scale):
    """h: (M, H) bf16 with M = batch*seq; add_mask: (batch, 1, seq) f32.
    One pallas_call per layer, gridded over the batch dimension."""
    M, H = h.shape
    D = H // num_heads
    ce = pl.CostEstimate(
        flops=8 * M * H * H + 4 * M * seq * H,            # qkv + qk^T + pv + wo
        transcendentals=M * num_heads * seq,              # softmax exp
        bytes_accessed=2 * (2 * M * H) + 2 * (4 * H * H) + 4 * batch * seq + 4 * 8 * H)
    return pl.pallas_call(
        functools.partial(_attn_block_kernel, num_heads=num_heads, D=D, scale=scale),
        out_shape=jax.ShapeDtypeStruct((M, H), MATMUL_DTYPE),
        grid=(batch,),
        in_specs=[pl.BlockSpec((seq, H), lambda b: (b, 0)),        # this batch's rows
                  pl.BlockSpec((1, 1, seq), lambda b: (b, 0, 0)),
                  pl.BlockSpec((H, 3 * H), lambda b: (0, 0)),      # weights stay resident
                  pl.BlockSpec((1, 3 * H), lambda b: (0, 0)),
                  pl.BlockSpec((H, H), lambda b: (0, 0)),
                  pl.BlockSpec((1, H), lambda b: (0, 0)),
                  pl.BlockSpec((1, H), lambda b: (0, 0)),
                  pl.BlockSpec((1, H), lambda b: (0, 0))],
        out_specs=pl.BlockSpec((seq, H), lambda b: (b, 0)),
        compiler_params=_compiler_params(1),
        cost_estimate=ce,
    )(h, add_mask, w_qkv, b_qkv.reshape(1, 3 * H), wo,
      bo.reshape(1, H), ln_g.reshape(1, H), ln_b.reshape(1, H))


# ---------------------------------------------------------------------------
# Fused FFN block:  LN2(x + gelu(x @ wi + bi) @ wf + bf)
# ---------------------------------------------------------------------------
def _ffn_kernel(x_ref, wi_ref, bi_ref, wf_ref, bf_ref, g_ref, bt_ref, o_ref):
    x = x_ref[...]                                        # (tm, H) bf16
    inter = jnp.dot(x.astype(wi_ref.dtype), wi_ref[...],
                    preferred_element_type=jnp.float32) + bi_ref[...]
    # TODO(synk): HF BERT uses exact (erf) GELU; tanh approximation used here
    # for guaranteed Mosaic lowering of the transcendental.
    inter = jax.nn.gelu(inter, approximate=True)
    y = jnp.dot(inter.astype(wf_ref.dtype), wf_ref[...],
                preferred_element_type=jnp.float32) + bf_ref[...]
    y = y + x.astype(jnp.float32)                         # residual
    mu = jnp.mean(y, axis=-1, keepdims=True)
    var = jnp.mean(jnp.square(y - mu), axis=-1, keepdims=True)
    y = (y - mu) * jax.lax.rsqrt(var + LN_EPS)
    o_ref[...] = (y * g_ref[...] + bt_ref[...]).astype(o_ref.dtype)


def ffn_block(x, wi, bi, wf, bf, ln_g, ln_b):
    """x: (M, H) bf16. The (tm, I) intermediate stays in VMEM (no HBM round-trip)."""
    M, H = x.shape
    I = wi.shape[1]
    tm = _m_tile(M)
    ce = pl.CostEstimate(
        flops=4 * M * H * I + 10 * M * H,
        transcendentals=M * I,
        bytes_accessed=2 * (2 * M * H) + 2 * (2 * H * I) + 4 * (I + 3 * H))
    return pl.pallas_call(
        _ffn_kernel,
        out_shape=jax.ShapeDtypeStruct((M, H), MATMUL_DTYPE),
        grid=(pl.cdiv(M, tm),),
        in_specs=[pl.BlockSpec((tm, H), lambda i: (i, 0)),
                  pl.BlockSpec((H, I), lambda i: (0, 0)),          # wi resident
                  pl.BlockSpec((1, I), lambda i: (0, 0)),
                  pl.BlockSpec((I, H), lambda i: (0, 0)),          # wf resident
                  pl.BlockSpec((1, H), lambda i: (0, 0)),
                  pl.BlockSpec((1, H), lambda i: (0, 0)),
                  pl.BlockSpec((1, H), lambda i: (0, 0))],
        out_specs=pl.BlockSpec((tm, H), lambda i: (i, 0)),
        compiler_params=_compiler_params(1),
        cost_estimate=ce,
    )(x, wi, bi.reshape(1, I), wf, bf.reshape(1, H),
      ln_g.reshape(1, H), ln_b.reshape(1, H))


# ---------------------------------------------------------------------------
# Plain linear (NER head), embeddings LayerNorm, pooler+RE head
# ---------------------------------------------------------------------------
def _linear_kernel(x_ref, w_ref, b_ref, o_ref):
    x = x_ref[...].astype(w_ref.dtype)
    y = jnp.dot(x, w_ref[...], preferred_element_type=jnp.float32) + b_ref[...]
    o_ref[...] = y.astype(o_ref.dtype)


def linear(x, w, b, out_dtype=None):
    """x: (M, K) @ w: (K, N) + b, tiled over M with the weight pinned in VMEM."""
    M, K = x.shape
    N = w.shape[1]
    out_dtype = out_dtype or x.dtype
    tm = _m_tile(M)
    ce = pl.CostEstimate(
        flops=2 * M * K * N, transcendentals=0,
        bytes_accessed=M * K * x.dtype.itemsize + K * N * w.dtype.itemsize
        + N * 4 + M * N * jnp.dtype(out_dtype).itemsize)
    return pl.pallas_call(
        _linear_kernel,
        out_shape=jax.ShapeDtypeStruct((M, N), out_dtype),
        grid=(pl.cdiv(M, tm),),
        in_specs=[pl.BlockSpec((tm, K), lambda i: (i, 0)),
                  pl.BlockSpec((K, N), lambda i: (0, 0)),
                  pl.BlockSpec((1, N), lambda i: (0, 0))],
        out_specs=pl.BlockSpec((tm, N), lambda i: (i, 0)),
        compiler_params=_compiler_params(1),
        cost_estimate=ce,
    )(x, w, b.reshape(1, N))


def _ln_kernel(x_ref, g_ref, b_ref, o_ref):
    x = x_ref[...].astype(jnp.float32)
    mu = jnp.mean(x, axis=-1, keepdims=True)
    var = jnp.mean(jnp.square(x - mu), axis=-1, keepdims=True)
    y = (x - mu) * jax.lax.rsqrt(var + LN_EPS)
    o_ref[...] = (y * g_ref[...] + b_ref[...]).astype(o_ref.dtype)


def layernorm(x, gamma, beta, out_dtype=MATMUL_DTYPE):
    M, H = x.shape
    tm = _m_tile(M)
    return pl.pallas_call(
        _ln_kernel,
        out_shape=jax.ShapeDtypeStruct((M, H), out_dtype),
        grid=(pl.cdiv(M, tm),),
        in_specs=[pl.BlockSpec((tm, H), lambda i: (i, 0)),
                  pl.BlockSpec((1, H), lambda i: (0, 0)),
                  pl.BlockSpec((1, H), lambda i: (0, 0))],
        out_specs=pl.BlockSpec((tm, H), lambda i: (i, 0)),
        compiler_params=_compiler_params(1),
    )(x, gamma.reshape(1, H), beta.reshape(1, H))


def _pool_re_kernel(cls_ref, pw_ref, pb_ref, rw_ref, rb_ref, o_ref):
    x = cls_ref[...].astype(pw_ref.dtype)
    pooled = jnp.tanh(
        jnp.dot(x, pw_ref[...], preferred_element_type=jnp.float32) + pb_ref[...])
    y = jnp.dot(pooled.astype(rw_ref.dtype), rw_ref[...],
                preferred_element_type=jnp.float32) + rb_ref[...]
    o_ref[...] = y.astype(o_ref.dtype)


def pooler_re_head(cls, pool_w, pool_b, re_w, re_b):
    """Fused pooler (tanh dense on CLS) + re_classifier; re_w is lane-padded."""
    B, H = cls.shape
    N = re_w.shape[1]
    ce = pl.CostEstimate(
        flops=2 * B * H * H + 2 * B * H * N, transcendentals=B * H,
        bytes_accessed=B * H * cls.dtype.itemsize + 2 * (H * H + H * N)
        + 4 * (H + N) + 4 * B * N)
    return pl.pallas_call(
        _pool_re_kernel,
        out_shape=jax.ShapeDtypeStruct((B, N), jnp.float32),
        in_specs=[VMEM_SPEC] * 5,
        out_specs=VMEM_SPEC,
        compiler_params=pltpu.CompilerParams(vmem_limit_bytes=VMEM_LIMIT),
        cost_estimate=ce,
    )(cls, pool_w, pool_b.reshape(1, H), re_w, re_b.reshape(1, N))


# ---------------------------------------------------------------------------
# Deterministic parameter init (synthetic "bert-base-uncased" stand-in)
# ---------------------------------------------------------------------------
def _pad_cols(w, n_pad):
    return jnp.pad(w, ((0, 0), (0, n_pad - w.shape[1]))) if w.shape[1] < n_pad else w


def init_params(key, cfg):
    H, I = cfg["hidden"], cfg["intermediate"]

    def nrm(k, shape):
        return (0.02 * jax.random.normal(k, shape)).astype(jnp.float32)

    keys = iter(jax.random.split(key, 16 + 16 * cfg["layers"]))
    ner_pad = _round_up(cfg["ner_labels"], LANE)
    re_pad = _round_up(cfg["re_labels"], LANE)
    params = {
        "word_emb": nrm(next(keys), (cfg["vocab"], H)),
        "pos_emb": nrm(next(keys), (cfg["max_pos"], H)),
        "type_emb": nrm(next(keys), (2, H)),
        "emb_ln_g": jnp.ones((H,), jnp.float32),
        "emb_ln_b": jnp.zeros((H,), jnp.float32),
        "pool_w": nrm(next(keys), (H, H)).astype(MATMUL_DTYPE),
        "pool_b": jnp.zeros((H,), jnp.float32),
        # classifier weights are lane-padded to 128 for dense stores; sliced in JAX
        "ner_w": _pad_cols(nrm(next(keys), (H, cfg["ner_labels"])), ner_pad).astype(MATMUL_DTYPE),
        "ner_b": jnp.zeros((ner_pad,), jnp.float32),
        "re_w": _pad_cols(nrm(next(keys), (H, cfg["re_labels"])), re_pad).astype(MATMUL_DTYPE),
        "re_b": jnp.zeros((re_pad,), jnp.float32),
        "layers": [],
    }
    for _ in range(cfg["layers"]):
        wq, wk, wv = nrm(next(keys), (H, H)), nrm(next(keys), (H, H)), nrm(next(keys), (H, H))
        params["layers"].append({
            "w_qkv": jnp.concatenate([wq, wk, wv], axis=1).astype(MATMUL_DTYPE),
            "b_qkv": jnp.zeros((3 * H,), jnp.float32),
            "wo": nrm(next(keys), (H, H)).astype(MATMUL_DTYPE),
            "bo": jnp.zeros((H,), jnp.float32),
            "ln1_g": jnp.ones((H,), jnp.float32), "ln1_b": jnp.zeros((H,), jnp.float32),
            "wi": nrm(next(keys), (H, I)).astype(MATMUL_DTYPE),
            "bi": jnp.zeros((I,), jnp.float32),
            "wf": nrm(next(keys), (I, H)).astype(MATMUL_DTYPE),
            "bf": jnp.zeros((H,), jnp.float32),
            "ln2_g": jnp.ones((H,), jnp.float32), "ln2_b": jnp.zeros((H,), jnp.float32),
        })
    return params


# ---------------------------------------------------------------------------
# Forward (mirrors NER_RE_Model.forward)
# ---------------------------------------------------------------------------
def ner_re_forward(params, input_ids, attention_mask, cfg):
    B, S = input_ids.shape
    H, nH = cfg["hidden"], cfg["heads"]
    D = H // nH
    scale = 1.0 / math.sqrt(D)
    M = B * S

    # --- embeddings (gathers are plain-JAX glue; LN is a Pallas kernel, bf16 out) ---
    pos = jnp.arange(S)
    emb = (params["word_emb"][input_ids]
           + params["pos_emb"][pos][None, :, :]
           + params["type_emb"][0][None, None, :])        # token_type_ids == 0
    h = layernorm(emb.reshape(M, H), params["emb_ln_g"], params["emb_ln_b"])

    add_mask = ((1.0 - attention_mask.astype(jnp.float32)) * -10000.0).reshape(B, 1, S)

    # --- transformer encoder layers: 2 fused pallas_calls per layer ---
    for lyr in params["layers"]:
        h = attention_block(h, add_mask, lyr["w_qkv"], lyr["b_qkv"],
                            lyr["wo"], lyr["bo"], lyr["ln1_g"], lyr["ln1_b"],
                            batch=B, seq=S, num_heads=nH, scale=scale)
        h = ffn_block(h, lyr["wi"], lyr["bi"], lyr["wf"], lyr["bf"],
                      lyr["ln2_g"], lyr["ln2_b"])

    # --- heads ---
    ner_full = linear(h, params["ner_w"], params["ner_b"], out_dtype=jnp.float32)
    ner_logits = ner_full[:, :cfg["ner_labels"]].reshape(B, S, cfg["ner_labels"])

    cls = h.reshape(B, S, H)[:, 0, :]                     # tiny CLS gather (JAX slice)
    re_logits = pooler_re_head(cls, params["pool_w"], params["pool_b"],
                               params["re_w"], params["re_b"])[:, :cfg["re_labels"]]

    return {"ner_logits": ner_logits, "re_logits": re_logits}


# ---------------------------------------------------------------------------
if __name__ == "__main__":
    cfg = dict(vocab=100, hidden=32, heads=2, layers=2, intermediate=64,
               max_pos=16, ner_labels=5, re_labels=3)
    B, S = 2, 8

    key = jax.random.PRNGKey(0)
    k_param, k_ids = jax.random.split(key)
    params = init_params(k_param, cfg)

    input_ids = jax.random.randint(k_ids, (B, S), 0, cfg["vocab"], dtype=jnp.int32)
    attention_mask = jnp.array(
        [[1, 1, 1, 1, 1, 1, 1, 1],
         [1, 1, 1, 1, 1, 0, 0, 0]], dtype=jnp.float32)

    fwd = jax.jit(functools.partial(ner_re_forward, cfg=cfg))
    out = fwd(params, input_ids, attention_mask)
    jax.block_until_ready(out)

    assert out["ner_logits"].shape == (B, S, cfg["ner_labels"])
    assert out["re_logits"].shape == (B, cfg["re_labels"])
    assert jnp.all(jnp.isfinite(out["ner_logits"])) and jnp.all(jnp.isfinite(out["re_logits"]))
    print("KERNEL_OK")
</pallas_src>

<mosaic_0001>
module attributes {stable_mosaic.version = 11 : i64} {
  func.func @_ln_kernel(%arg0: i32, %arg1: memref<16x32xf32, #tpu.memory_space<vmem>>, %arg2: memref<1x32xf32, #tpu.memory_space<vmem>>, %arg3: memref<1x32xf32, #tpu.memory_space<vmem>>, %arg4: memref<16x32xbf16, #tpu.memory_space<vmem>>) attributes {dimension_semantics = [#tpu.dimension_semantics<parallel>], iteration_bounds = array<i64: 1>, scalar_prefetch = 0 : i64, scratch_operands = 0 : i64, tpu.core_type = #tpu.core_type<tc>, window_params = [{transform_indices = @transform_0, window_bounds = array<i64: 16, 32>}, {pipeline_mode = #tpu.pipeline_mode<synchronous>, transform_indices = @transform_1, window_bounds = array<i64: 1, 32>}, {pipeline_mode = #tpu.pipeline_mode<synchronous>, transform_indices = @transform_2, window_bounds = array<i64: 1, 32>}, {transform_indices = @transform_3, window_bounds = array<i64: 16, 32>}]} {
    %c0 = arith.constant 0 : index
    %c0_0 = arith.constant 0 : index
    %0 = vector.load %arg1[%c0, %c0_0] : memref<16x32xf32, #tpu.memory_space<vmem>>, vector<16x32xf32>
    %cst = arith.constant dense<0.000000e+00> : vector<16xf32>
    %1 = vector.multi_reduction <add>, %0, %cst [1] : vector<16x32xf32> to vector<16xf32>
    %2 = vector.shape_cast %1 : vector<16xf32> to vector<16x1xf32>
    %cst_1 = arith.constant 3.200000e+01 : f32
    %3 = vector.broadcast %cst_1 : f32 to vector<16x1xf32>
    %4 = arith.divf %2, %3 : vector<16x1xf32>
    %5 = vector.broadcast %4 : vector<16x1xf32> to vector<16x32xf32>
    %6 = arith.subf %0, %5 : vector<16x32xf32>
    %7 = arith.mulf %6, %6 : vector<16x32xf32>
    %cst_2 = arith.constant dense<0.000000e+00> : vector<16xf32>
    %8 = vector.multi_reduction <add>, %7, %cst_2 [1] : vector<16x32xf32> to vector<16xf32>
    %9 = vector.shape_cast %8 : vector<16xf32> to vector<16x1xf32>
    %cst_3 = arith.constant 3.200000e+01 : f32
    %10 = vector.broadcast %cst_3 : f32 to vector<16x1xf32>
    %11 = arith.divf %9, %10 : vector<16x1xf32>
    %12 = vector.broadcast %4 : vector<16x1xf32> to vector<16x32xf32>
    %13 = arith.subf %0, %12 : vector<16x32xf32>
    %cst_4 = arith.constant 9.99999996E-13 : f32
    %14 = vector.broadcast %cst_4 : f32 to vector<16x1xf32>
    %15 = arith.addf %11, %14 : vector<16x1xf32>
    %16 = math.rsqrt %15 : vector<16x1xf32>
    %17 = vector.broadcast %16 : vector<16x1xf32> to vector<16x32xf32>
    %18 = arith.mulf %13, %17 : vector<16x32xf32>
    %c0_5 = arith.constant 0 : index
    %c0_6 = arith.constant 0 : index
    %19 = vector.load %arg2[%c0_5, %c0_6] : memref<1x32xf32, #tpu.memory_space<vmem>>, vector<1x32xf32>
    %20 = vector.broadcast %19 : vector<1x32xf32> to vector<16x32xf32>
    %21 = arith.mulf %18, %20 : vector<16x32xf32>
    %c0_7 = arith.constant 0 : index
    %c0_8 = arith.constant 0 : index
    %22 = vector.load %arg3[%c0_7, %c0_8] : memref<1x32xf32, #tpu.memory_space<vmem>>, vector<1x32xf32>
    %23 = vector.broadcast %22 : vector<1x32xf32> to vector<16x32xf32>
    %24 = arith.addf %21, %23 : vector<16x32xf32>
    %25 = arith.truncf %24 : vector<16x32xf32> to vector<16x32xbf16>
    %c0_9 = arith.constant 0 : index
    %c0_10 = arith.constant 0 : index
    %26 = vector.load %arg4[%c0_9, %c0_10] : memref<16x32xbf16, #tpu.memory_space<vmem>>, vector<16x32xbf16>
    tpu.vector_store %arg4[%c0_9, %c0_10], %25 {strides = array<i32>} : memref<16x32xbf16, #tpu.memory_space<vmem>>, vector<16x32xbf16>,
    return
  }
  func.func @transform_0(%arg0: i32) -> (i32, i32) {
    %c0_i32 = arith.constant 0 : i32
    %c0_i32_0 = arith.constant 0 : i32
    return %arg0, %c0_i32 : i32, i32
  }
  func.func @transform_1(%arg0: i32) -> (i32, i32) {
    %c0_i32 = arith.constant 0 : i32
    %c0_i32_0 = arith.constant 0 : i32
    %c0_i32_1 = arith.constant 0 : i32
    return %c0_i32, %c0_i32_0 : i32, i32
  }
  func.func @transform_2(%arg0: i32) -> (i32, i32) {
    %c0_i32 = arith.constant 0 : i32
    %c0_i32_0 = arith.constant 0 : i32
    %c0_i32_1 = arith.constant 0 : i32
    return %c0_i32, %c0_i32_0 : i32, i32
  }
  func.func @transform_3(%arg0: i32) -> (i32, i32) {
    %c0_i32 = arith.constant 0 : i32
    %c0_i32_0 = arith.constant 0 : i32
    return %arg0, %c0_i32 : i32, i32
  }
}

module attributes {stable_mosaic.version = 11 : i64} {
  func.func @_attn_block_kernel(%arg0: i32, %arg1: memref<8x32xbf16, #tpu.memory_space<vmem>>, %arg2: memref<1x1x8xf32, #tpu.memory_space<vmem>>, %arg3: memref<32x96xbf16, #tpu.memory_space<vmem>>, %arg4: memref<1x96xf32, #tpu.memory_space<vmem>>, %arg5: memref<32x32xbf16, #tpu.memory_space<vmem>>, %arg6: memref<1x32xf32, #tpu.memory_space<vmem>>, %arg7: memref<1x32xf32, #tpu.memory_space<vmem>>, %arg8: memref<1x32xf32, #tpu.memory_space<vmem>>, %arg9: memref<8x32xbf16, #tpu.memory_space<vmem>>) attributes {dimension_semantics = [#tpu.dimension_semantics<parallel>], iteration_bounds = array<i64: 2>, scalar_prefetch = 0 : i64, scratch_operands = 0 : i64, tpu.core_type = #tpu.core_type<tc>, window_params = [{transform_indices = @transform_0, window_bounds = array<i64: 8, 32>}, {transform_indices = @transform_1, window_bounds = array<i64: 1, 1, 8>}, {pipeline_mode = #tpu.pipeline_mode<synchronous>, transform_indices = @transform_2, window_bounds = array<i64: 32, 96>}, {pipeline_mode = #tpu.pipeline_mode<synchronous>, transform_indices = @transform_3, window_bounds = array<i64: 1, 96>}, {pipeline_mode = #tpu.pipeline_mode<synchronous>, transform_indices = @transform_4, window_bounds = array<i64: 32, 32>}, {pipeline_mode = #tpu.pipeline_mode<synchronous>, transform_indices = @transform_5, window_bounds = array<i64: 1, 32>}, {pipeline_mode = #tpu.pipeline_mode<synchronous>, transform_indices = @transform_6, window_bounds = array<i64: 1, 32>}, {pipeline_mode = #tpu.pipeline_mode<synchronous>, transform_indices = @transform_7, window_bounds = array<i64: 1, 32>}, {transform_indices = @transform_8, window_bounds = array<i64: 8, 32>}]} {
    %c0 = arith.constant 0 : index
    %c0_0 = arith.constant 0 : index
    %0 = vector.load %arg1[%c0, %c0_0] : memref<8x32xbf16, #tpu.memory_space<vmem>>, vector<8x32xbf16>
    %c0_1 = arith.constant 0 : index
    %c0_2 = arith.constant 0 : index
    %c0_3 = arith.constant 0 : index
    %1 = vector.load %arg2[%c0_1, %c0_2, %c0_3] : memref<1x1x8xf32, #tpu.memory_space<vmem>>, vector<1x1x8xf32>
    %2 = vector.shape_cast %1 : vector<1x1x8xf32> to vector<1x8xf32>
    %c0_4 = arith.constant 0 : index
    %c0_5 = arith.constant 0 : index
    %3 = vector.load %arg3[%c0_4, %c0_5] : memref<32x96xbf16, #tpu.memory_space<vmem>>, vector<32x96xbf16>
    %cst = arith.constant dense<0.000000e+00> : vector<8x96xf32>
    %4 = tpu.matmul %0, %3, %cst {dimension_numbers = #tpu.dot_dimension_numbers<[1], [0], [0], [1], [0, 0, 1, 1], [], []>} : vector<8x32xbf16>, vector<32x96xbf16>, vector<8x96xf32> -> vector<8x96xf32>
    %c0_6 = arith.constant 0 : index
    %c0_7 = arith.constant 0 : index
    %5 = vector.load %arg4[%c0_6, %c0_7] : memref<1x96xf32, #tpu.memory_space<vmem>>, vector<1x96xf32>
    %6 = vector.broadcast %5 : vector<1x96xf32> to vector<8x96xf32>
    %7 = arith.addf %4, %6 : vector<8x96xf32>
    %8 = arith.truncf %7 : vector<8x96xf32> to vector<8x96xbf16>
    %cst_8 = arith.constant 0.000000e+00 : f32
    %9 = vector.broadcast %cst_8 : f32 to vector<8x32xf32>
    %10 = vector.extract_strided_slice %8 {offsets = [0, 0], sizes = [8, 16], strides = [1, 1]} : vector<8x96xbf16> to vector<8x16xbf16>
    %11 = vector.extract_strided_slice %8 {offsets = [0, 32], sizes = [8, 16], strides = [1, 1]} : vector<8x96xbf16> to vector<8x16xbf16>
    %12 = vector.extract_strided_slice %8 {offsets = [0, 64], sizes = [8, 16], strides = [1, 1]} : vector<8x96xbf16> to vector<8x16xbf16>
    %cst_9 = arith.constant dense<0.000000e+00> : vector<8x8xf32>
    %13 = tpu.matmul %10, %11, %cst_9 {dimension_numbers = #tpu.dot_dimension_numbers<[1], [1], [0], [0], [0, 0, 1, 0], [], []>} : vector<8x16xbf16>, vector<8x16xbf16>, vector<8x8xf32> -> vector<8x8xf32>
    %cst_10 = arith.constant 2.500000e-01 : f32
    %14 = vector.broadcast %cst_10 : f32 to vector<8x8xf32>
    %15 = arith.mulf %13, %14 : vector<8x8xf32>
    %16 = vector.broadcast %2 : vector<1x8xf32> to vector<8x8xf32>
    %17 = arith.addf %15, %16 : vector<8x8xf32>
    %cst_11 = arith.constant dense<0xFF800000> : vector<8xf32>
    %18 = vector.multi_reduction <maximumf>, %17, %cst_11 [1] : vector<8x8xf32> to vector<8xf32>
    %19 = vector.shape_cast %18 : vector<8xf32> to vector<8x1xf32>
    %20 = vector.broadcast %19 : vector<8x1xf32> to vector<8x8xf32>
    %21 = arith.subf %17, %20 : vector<8x8xf32>
    %22 = math.exp %21 : vector<8x8xf32>
    %cst_12 = arith.constant dense<0.000000e+00> : vector<8xf32>
    %23 = vector.multi_reduction <add>, %22, %cst_12 [1] : vector<8x8xf32> to vector<8xf32>
    %24 = vector.shape_cast %23 : vector<8xf32> to vector<8x1xf32>
    %25 = tpu.reciprocal %24 {approx = true} : vector<8x1xf32> -> vector<8x1xf32>
    %26 = vector.broadcast %25 : vector<8x1xf32> to vector<8x8xf32>
    %27 = arith.mulf %22, %26 : vector<8x8xf32>
    %28 = arith.truncf %27 : vector<8x8xf32> to vector<8x8xbf16>
    %cst_13 = arith.constant dense<0.000000e+00> : vector<8x16xf32>
    %29 = tpu.matmul %28, %12, %cst_13 {dimension_numbers = #tpu.dot_dimension_numbers<[1], [0], [0], [1], [0, 0, 1, 1], [], []>} : vector<8x8xbf16>, vector<8x16xbf16>, vector<8x16xf32> -> vector<8x16xf32>
    %30 = arith.truncf %29 : vector<8x16xf32> to vector<8x16xbf16>
    %c0_14 = arith.constant 0 : index
    %c0_15 = arith.constant 0 : index
    %31 = vector.load %arg5[%c0_14, %c0_15] : memref<32x32xbf16, #tpu.memory_space<vmem>>, vector<16x32xbf16>
    %cst_16 = arith.constant dense<0.000000e+00> : vector<8x32xf32>
    %32 = tpu.matmul %30, %31, %cst_16 {dimension_numbers = #tpu.dot_dimension_numbers<[1], [0], [0], [1], [0, 0, 1, 1], [], []>} : vector<8x16xbf16>, vector<16x32xbf16>, vector<8x32xf32> -> vector<8x32xf32>
    %33 = arith.addf %9, %32 : vector<8x32xf32>
    %34 = vector.extract_strided_slice %8 {offsets = [0, 16], sizes = [8, 16], strides = [1, 1]} : vector<8x96xbf16> to vector<8x16xbf16>
    %35 = vector.extract_strided_slice %8 {offsets = [0, 48], sizes = [8, 16], strides = [1, 1]} : vector<8x96xbf16> to vector<8x16xbf16>
    %36 = vector.extract_strided_slice %8 {offsets = [0, 80], sizes = [8, 16], strides = [1, 1]} : vector<8x96xbf16> to vector<8x16xbf16>
    %cst_17 = arith.constant dense<0.000000e+00> : vector<8x8xf32>
    %37 = tpu.matmul %34, %35, %cst_17 {dimension_numbers = #tpu.dot_dimension_numbers<[1], [1], [0], [0], [0, 0, 1, 0], [], []>} : vector<8x16xbf16>, vector<8x16xbf16>, vector<8x8xf32> -> vector<8x8xf32>
    %cst_18 = arith.constant 2.500000e-01 : f32
    %38 = vector.broadcast %cst_18 : f32 to vector<8x8xf32>
    %39 = arith.mulf %37, %38 : vector<8x8xf32>
    %40 = vector.broadcast %2 : vector<1x8xf32> to vector<8x8xf32>
    %41 = arith.addf %39, %40 : vector<8x8xf32>
    %cst_19 = arith.constant dense<0xFF800000> : vector<8xf32>
    %42 = vector.multi_reduction <maximumf>, %41, %cst_19 [1] : vector<8x8xf32> to vector<8xf32>
    %43 = vector.shape_cast %42 : vector<8xf32> to vector<8x1xf32>
    %44 = vector.broadcast %43 : vector<8x1xf32> to vector<8x8xf32>
    %45 = arith.subf %41, %44 : vector<8x8xf32>
    %46 = math.exp %45 : vector<8x8xf32>
    %cst_20 = arith.constant dense<0.000000e+00> : vector<8xf32>
    %47 = vector.multi_reduction <add>, %46, %cst_20 [1] : vector<8x8xf32> to vector<8xf32>
    %48 = vector.shape_cast %47 : vector<8xf32> to vector<8x1xf32>
    %49 = tpu.reciprocal %48 {approx = true} : vector<8x1xf32> -> vector<8x1xf32>
    %50 = vector.broadcast %49 : vector<8x1xf32> to vector<8x8xf32>
    %51 = arith.mulf %46, %50 : vector<8x8xf32>
    %52 = arith.truncf %51 : vector<8x8xf32> to vector<8x8xbf16>
    %cst_21 = arith.constant dense<0.000000e+00> : vector<8x16xf32>
    %53 = tpu.matmul %52, %36, %cst_21 {dimension_numbers = #tpu.dot_dimension_numbers<[1], [0], [0], [1], [0, 0, 1, 1], [], []>} : vector<8x8xbf16>, vector<8x16xbf16>, vector<8x16xf32> -> vector<8x16xf32>
    %54 = arith.truncf %53 : vector<8x16xf32> to vector<8x16xbf16>
    %c16 = arith.constant 16 : index
    %c0_22 = arith.constant 0 : index
    %55 = vector.load %arg5[%c16, %c0_22] : memref<32x32xbf16, #tpu.memory_space<vmem>>, vector<16x32xbf16>
    %cst_23 = arith.constant dense<0.000000e+00> : vector<8x32xf32>
    %56 = tpu.matmul %54, %55, %cst_23 {dimension_numbers = #tpu.dot_dimension_numbers<[1], [0], [0], [1], [0, 0, 1, 1], [], []>} : vector<8x16xbf16>, vector<16x32xbf16>, vector<8x32xf32> -> vector<8x32xf32>
    %57 = arith.addf %33, %56 : vector<8x32xf32>
    %c0_24 = arith.constant 0 : index
    %c0_25 = arith.constant 0 : index
    %58 = vector.load %arg6[%c0_24, %c0_25] : memref<1x32xf32, #tpu.memory_space<vmem>>, vector<1x32xf32>
    %59 = vector.broadcast %58 : vector<1x32xf32> to vector<8x32xf32>
    %60 = arith.addf %57, %59 : vector<8x32xf32>
    %61 = arith.extf %0 : vector<8x32xbf16> to vector<8x32xf32>
    %62 = arith.addf %60, %61 : vector<8x32xf32>
    %cst_26 = arith.constant dense<0.000000e+00> : vector<8xf32>
    %63 = vector.multi_reduction <add>, %62, %cst_26 [1] : vector<8x32xf32> to vector<8xf32>
    %64 = vector.shape_cast %63 : vector<8xf32> to vector<8x1xf32>
    %cst_27 = arith.constant 3.200000e+01 : f32
    %65 = vector.broadcast %cst_27 : f32 to vector<8x1xf32>
    %66 = arith.divf %64, %65 : vector<8x1xf32>
    %67 = vector.broadcast %66 : vector<8x1xf32> to vector<8x32xf32>
    %68 = arith.subf %62, %67 : vector<8x32xf32>
    %69 = arith.mulf %68, %68 : vector<8x32xf32>
    %cst_28 = arith.constant dense<0.000000e+00> : vector<8xf32>
    %70 = vector.multi_reduction <add>, %69, %cst_28 [1] : vector<8x32xf32> to vector<8xf32>
    %71 = vector.shape_cast %70 : vector<8xf32> to vector<8x1xf32>
    %cst_29 = arith.constant 3.200000e+01 : f32
    %72 = vector.broadcast %cst_29 : f32 to vector<8x1xf32>
    %73 = arith.divf %71, %72 : vector<8x1xf32>
    %74 = vector.broadcast %66 : vector<8x1xf32> to vector<8x32xf32>
    %75 = arith.subf %62, %74 : vector<8x32xf32>
    %cst_30 = arith.constant 9.99999996E-13 : f32
    %76 = vector.broadcast %cst_30 : f32 to vector<8x1xf32>
    %77 = arith.addf %73, %76 : vector<8x1xf32>
    %78 = math.rsqrt %77 : vector<8x1xf32>
    %79 = vector.broadcast %78 : vector<8x1xf32> to vector<8x32xf32>
    %80 = arith.mulf %75, %79 : vector<8x32xf32>
    %c0_31 = arith.constant 0 : index
    %c0_32 = arith.constant 0 : index
    %81 = vector.load %arg7[%c0_31, %c0_32] : memref<1x32xf32, #tpu.memory_space<vmem>>, vector<1x32xf32>
    %82 = vector.broadcast %81 : vector<1x32xf32> to vector<8x32xf32>
    %83 = arith.mulf %80, %82 : vector<8x32xf32>
    %c0_33 = arith.constant 0 : index
    %c0_34 = arith.constant 0 : index
    %84 = vector.load %arg8[%c0_33, %c0_34] : memref<1x32xf32, #tpu.memory_space<vmem>>, vector<1x32xf32>
    %85 = vector.broadcast %84 : vector<1x32xf32> to vector<8x32xf32>
    %86 = arith.addf %83, %85 : vector<8x32xf32>
    %87 = arith.truncf %86 : vector<8x32xf32> to vector<8x32xbf16>
    %c0_35 = arith.constant 0 : index
    %c0_36 = arith.constant 0 : index
    %88 = vector.load %arg9[%c0_35, %c0_36] : memref<8x32xbf16, #tpu.memory_space<vmem>>, vector<8x32xbf16>
    tpu.vector_store %arg9[%c0_35, %c0_36], %87 {strides = array<i32>} : memref<8x32xbf16, #tpu.memory_space<vmem>>, vector<8x32xbf16>,
    return
  }
  func.func @transform_0(%arg0: i32) -> (i32, i32) {
    %c0_i32 = arith.constant 0 : i32
    %c0_i32_0 = arith.constant 0 : i32
    return %arg0, %c0_i32 : i32, i32
  }
  func.func @transform_1(%arg0: i32) -> (i32, i32, i32) {
    %c0_i32 = arith.constant 0 : i32
    %c0_i32_0 = arith.constant 0 : i32
    %c0_i32_1 = arith.constant 0 : i32
    return %arg0, %c0_i32, %c0_i32_0 : i32, i32, i32
  }
  func.func @transform_2(%arg0: i32) -> (i32, i32) {
    %c0_i32 = arith.constant 0 : i32
    %c0_i32_0 = arith.constant 0 : i32
    %c0_i32_1 = arith.constant 0 : i32
    return %c0_i32, %c0_i32_0 : i32, i32
  }
  func.func @transform_3(%arg0: i32) -> (i32, i32) {
    %c0_i32 = arith.constant 0 : i32
    %c0_i32_0 = arith.constant 0 : i32
    %c0_i32_1 = arith.constant 0 : i32
    return %c0_i32, %c0_i32_0 : i32, i32
  }
  func.func @transform_4(%arg0: i32) -> (i32, i32) {
    %c0_i32 = arith.constant 0 : i32
    %c0_i32_0 = arith.constant 0 : i32
    %c0_i32_1 = arith.constant 0 : i32
    return %c0_i32, %c0_i32_0 : i32, i32
  }
  func.func @transform_5(%arg0: i32) -> (i32, i32) {
    %c0_i32 = arith.constant 0 : i32
    %c0_i32_0 = arith.constant 0 : i32
    %c0_i32_1 = arith.constant 0 : i32
    return %c0_i32, %c0_i32_0 : i32, i32
  }
  func.func @transform_6(%arg0: i32) -> (i32, i32) {
    %c0_i32 = arith.constant 0 : i32
    %c0_i32_0 = arith.constant 0 : i32
    %c0_i32_1 = arith.constant 0 : i32
    return %c0_i32, %c0_i32_0 : i32, i32
  }
  func.func @transform_7(%arg0: i32) -> (i32, i32) {
    %c0_i32 = arith.constant 0 : i32
    %c0_i32_0 = arith.constant 0 : i32
    %c0_i32_1 = arith.constant 0 : i32
    return %c0_i32, %c0_i32_0 : i32, i32
  }
  func.func @transform_8(%arg0: i32) -> (i32, i32) {
    %c0_i32 = arith.constant 0 : i32
    %c0_i32_0 = arith.constant 0 : i32
    return %arg0, %c0_i32 : i32, i32
  }
}

module attributes {stable_mosaic.version = 11 : i64} {
  func.func @_linear_kernel(%arg0: i32, %arg1: memref<16x32xbf16, #tpu.memory_space<vmem>>, %arg2: memref<32x128xbf16, #tpu.memory_space<vmem>>, %arg3: memref<1x128xf32, #tpu.memory_space<vmem>>, %arg4: memref<16x128xf32, #tpu.memory_space<vmem>>) attributes {dimension_semantics = [#tpu.dimension_semantics<parallel>], iteration_bounds = array<i64: 1>, scalar_prefetch = 0 : i64, scratch_operands = 0 : i64, tpu.core_type = #tpu.core_type<tc>, window_params = [{transform_indices = @transform_0, window_bounds = array<i64: 16, 32>}, {pipeline_mode = #tpu.pipeline_mode<synchronous>, transform_indices = @transform_1, window_bounds = array<i64: 32, 128>}, {pipeline_mode = #tpu.pipeline_mode<synchronous>, transform_indices = @transform_2, window_bounds = array<i64: 1, 128>}, {transform_indices = @transform_3, window_bounds = array<i64: 16, 128>}]} {
    %c0 = arith.constant 0 : index
    %c0_0 = arith.constant 0 : index
    %0 = vector.load %arg1[%c0, %c0_0] : memref<16x32xbf16, #tpu.memory_space<vmem>>, vector<16x32xbf16>
    %c0_1 = arith.constant 0 : index
    %c0_2 = arith.constant 0 : index
    %1 = vector.load %arg2[%c0_1, %c0_2] : memref<32x128xbf16, #tpu.memory_space<vmem>>, vector<32x128xbf16>
    %cst = arith.constant dense<0.000000e+00> : vector<16x128xf32>
    %2 = tpu.matmul %0, %1, %cst {dimension_numbers = #tpu.dot_dimension_numbers<[1], [0], [0], [1], [0, 0, 1, 1], [], []>} : vector<16x32xbf16>, vector<32x128xbf16>, vector<16x128xf32> -> vector<16x128xf32>
    %c0_3 = arith.constant 0 : index
    %c0_4 = arith.constant 0 : index
    %3 = vector.load %arg3[%c0_3, %c0_4] : memref<1x128xf32, #tpu.memory_space<vmem>>, vector<1x128xf32>
    %4 = vector.broadcast %3 : vector<1x128xf32> to vector<16x128xf32>
    %5 = arith.addf %2, %4 : vector<16x128xf32>
    %c0_5 = arith.constant 0 : index
    %c0_6 = arith.constant 0 : index
    %6 = vector.load %arg4[%c0_5, %c0_6] : memref<16x128xf32, #tpu.memory_space<vmem>>, vector<16x128xf32>
    tpu.vector_store %arg4[%c0_5, %c0_6], %5 {strides = array<i32>} : memref<16x128xf32, #tpu.memory_space<vmem>>, vector<16x128xf32>,
    return
  }
  func.func @transform_0(%arg0: i32) -> (i32, i32) {
    %c0_i32 = arith.constant 0 : i32
    %c0_i32_0 = arith.constant 0 : i32
    return %arg0, %c0_i32 : i32, i32
  }
  func.func @transform_1(%arg0: i32) -> (i32, i32) {
    %c0_i32 = arith.constant 0 : i32
    %c0_i32_0 = arith.constant 0 : i32
    %c0_i32_1 = arith.constant 0 : i32
    return %c0_i32, %c0_i32_0 : i32, i32
  }
  func.func @transform_2(%arg0: i32) -> (i32, i32) {
    %c0_i32 = arith.constant 0 : i32
    %c0_i32_0 = arith.constant 0 : i32
    %c0_i32_1 = arith.constant 0 : i32
    return %c0_i32, %c0_i32_0 : i32, i32
  }
  func.func @transform_3(%arg0: i32) -> (i32, i32) {
    %c0_i32 = arith.constant 0 : i32
    %c0_i32_0 = arith.constant 0 : i32
    return %arg0, %c0_i32 : i32, i32
  }
}

module attributes {stable_mosaic.version = 11 : i64} {
  func.func @_ffn_kernel(%arg0: i32, %arg1: memref<16x32xbf16, #tpu.memory_space<vmem>>, %arg2: memref<32x64xbf16, #tpu.memory_space<vmem>>, %arg3: memref<1x64xf32, #tpu.memory_space<vmem>>, %arg4: memref<64x32xbf16, #tpu.memory_space<vmem>>, %arg5: memref<1x32xf32, #tpu.memory_space<vmem>>, %arg6: memref<1x32xf32, #tpu.memory_space<vmem>>, %arg7: memref<1x32xf32, #tpu.memory_space<vmem>>, %arg8: memref<16x32xbf16, #tpu.memory_space<vmem>>) attributes {dimension_semantics = [#tpu.dimension_semantics<parallel>], iteration_bounds = array<i64: 1>, scalar_prefetch = 0 : i64, scratch_operands = 0 : i64, tpu.core_type = #tpu.core_type<tc>, window_params = [{transform_indices = @transform_0, window_bounds = array<i64: 16, 32>}, {pipeline_mode = #tpu.pipeline_mode<synchronous>, transform_indices = @transform_1, window_bounds = array<i64: 32, 64>}, {pipeline_mode = #tpu.pipeline_mode<synchronous>, transform_indices = @transform_2, window_bounds = array<i64: 1, 64>}, {pipeline_mode = #tpu.pipeline_mode<synchronous>, transform_indices = @transform_3, window_bounds = array<i64: 64, 32>}, {pipeline_mode = #tpu.pipeline_mode<synchronous>, transform_indices = @transform_4, window_bounds = array<i64: 1, 32>}, {pipeline_mode = #tpu.pipeline_mode<synchronous>, transform_indices = @transform_5, window_bounds = array<i64: 1, 32>}, {pipeline_mode = #tpu.pipeline_mode<synchronous>, transform_indices = @transform_6, window_bounds = array<i64: 1, 32>}, {transform_indices = @transform_7, window_bounds = array<i64: 16, 32>}]} {
    %c0 = arith.constant 0 : index
    %c0_0 = arith.constant 0 : index
    %0 = vector.load %arg1[%c0, %c0_0] : memref<16x32xbf16, #tpu.memory_space<vmem>>, vector<16x32xbf16>
    %c0_1 = arith.constant 0 : index
    %c0_2 = arith.constant 0 : index
    %1 = vector.load %arg2[%c0_1, %c0_2] : memref<32x64xbf16, #tpu.memory_space<vmem>>, vector<32x64xbf16>
    %cst = arith.constant dense<0.000000e+00> : vector<16x64xf32>
    %2 = tpu.matmul %0, %1, %cst {dimension_numbers = #tpu.dot_dimension_numbers<[1], [0], [0], [1], [0, 0, 1, 1], [], []>} : vector<16x32xbf16>, vector<32x64xbf16>, vector<16x64xf32> -> vector<16x64xf32>
    %c0_3 = arith.constant 0 : index
    %c0_4 = arith.constant 0 : index
    %3 = vector.load %arg3[%c0_3, %c0_4] : memref<1x64xf32, #tpu.memory_space<vmem>>, vector<1x64xf32>
    %4 = vector.broadcast %3 : vector<1x64xf32> to vector<16x64xf32>
    %5 = arith.addf %2, %4 : vector<16x64xf32>
    %6 = arith.mulf %5, %5 : vector<16x64xf32>
    %7 = arith.mulf %5, %6 : vector<16x64xf32>
    %cst_5 = arith.constant 4.471500e-02 : f32
    %8 = vector.broadcast %cst_5 : f32 to vector<16x64xf32>
    %9 = arith.mulf %8, %7 : vector<16x64xf32>
    %10 = arith.addf %5, %9 : vector<16x64xf32>
    %cst_6 = arith.constant 0.797884583 : f32
    %11 = vector.broadcast %cst_6 : f32 to vector<16x64xf32>
    %12 = arith.mulf %11, %10 : vector<16x64xf32>
    %13 = math.tanh %12 : vector<16x64xf32>
    %cst_7 = arith.constant 1.000000e+00 : f32
    %14 = vector.broadcast %cst_7 : f32 to vector<16x64xf32>
    %15 = arith.addf %14, %13 : vector<16x64xf32>
    %cst_8 = arith.constant 5.000000e-01 : f32
    %16 = vector.broadcast %cst_8 : f32 to vector<16x64xf32>
    %17 = arith.mulf %16, %15 : vector<16x64xf32>
    %18 = arith.mulf %5, %17 : vector<16x64xf32>
    %19 = arith.truncf %18 : vector<16x64xf32> to vector<16x64xbf16>
    %c0_9 = arith.constant 0 : index
    %c0_10 = arith.constant 0 : index
    %20 = vector.load %arg4[%c0_9, %c0_10] : memref<64x32xbf16, #tpu.memory_space<vmem>>, vector<64x32xbf16>
    %cst_11 = arith.constant dense<0.000000e+00> : vector<16x32xf32>
    %21 = tpu.matmul %19, %20, %cst_11 {dimension_numbers = #tpu.dot_dimension_numbers<[1], [0], [0], [1], [0, 0, 1, 1], [], []>} : vector<16x64xbf16>, vector<64x32xbf16>, vector<16x32xf32> -> vector<16x32xf32>
    %c0_12 = arith.constant 0 : index
    %c0_13 = arith.constant 0 : index
    %22 = vector.load %arg5[%c0_12, %c0_13] : memref<1x32xf32, #tpu.memory_space<vmem>>, vector<1x32xf32>
    %23 = vector.broadcast %22 : vector<1x32xf32> to vector<16x32xf32>
    %24 = arith.addf %21, %23 : vector<16x32xf32>
    %25 = arith.extf %0 : vector<16x32xbf16> to vector<16x32xf32>
    %26 = arith.addf %24, %25 : vector<16x32xf32>
    %cst_14 = arith.constant dense<0.000000e+00> : vector<16xf32>
    %27 = vector.multi_reduction <add>, %26, %cst_14 [1] : vector<16x32xf32> to vector<16xf32>
    %28 = vector.shape_cast %27 : vector<16xf32> to vector<16x1xf32>
    %cst_15 = arith.constant 3.200000e+01 : f32
    %29 = vector.broadcast %cst_15 : f32 to vector<16x1xf32>
    %30 = arith.divf %28, %29 : vector<16x1xf32>
    %31 = vector.broadcast %30 : vector<16x1xf32> to vector<16x32xf32>
    %32 = arith.subf %26, %31 : vector<16x32xf32>
    %33 = arith.mulf %32, %32 : vector<16x32xf32>
    %cst_16 = arith.constant dense<0.000000e+00> : vector<16xf32>
    %34 = vector.multi_reduction <add>, %33, %cst_16 [1] : vector<16x32xf32> to vector<16xf32>
    %35 = vector.shape_cast %34 : vector<16xf32> to vector<16x1xf32>
    %cst_17 = arith.constant 3.200000e+01 : f32
    %36 = vector.broadcast %cst_17 : f32 to vector<16x1xf32>
    %37 = arith.divf %35, %36 : vector<16x1xf32>
    %38 = vector.broadcast %30 : vector<16x1xf32> to vector<16x32xf32>
    %39 = arith.subf %26, %38 : vector<16x32xf32>
    %cst_18 = arith.constant 9.99999996E-13 : f32
    %40 = vector.broadcast %cst_18 : f32 to vector<16x1xf32>
    %41 = arith.addf %37, %40 : vector<16x1xf32>
    %42 = math.rsqrt %41 : vector<16x1xf32>
    %43 = vector.broadcast %42 : vector<16x1xf32> to vector<16x32xf32>
    %44 = arith.mulf %39, %43 : vector<16x32xf32>
    %c0_19 = arith.constant 0 : index
    %c0_20 = arith.constant 0 : index
    %45 = vector.load %arg6[%c0_19, %c0_20] : memref<1x32xf32, #tpu.memory_space<vmem>>, vector<1x32xf32>
    %46 = vector.broadcast %45 : vector<1x32xf32> to vector<16x32xf32>
    %47 = arith.mulf %44, %46 : vector<16x32xf32>
    %c0_21 = arith.constant 0 : index
    %c0_22 = arith.constant 0 : index
    %48 = vector.load %arg7[%c0_21, %c0_22] : memref<1x32xf32, #tpu.memory_space<vmem>>, vector<1x32xf32>
    %49 = vector.broadcast %48 : vector<1x32xf32> to vector<16x32xf32>
    %50 = arith.addf %47, %49 : vector<16x32xf32>
    %51 = arith.truncf %50 : vector<16x32xf32> to vector<16x32xbf16>
    %c0_23 = arith.constant 0 : index
    %c0_24 = arith.constant 0 : index
    %52 = vector.load %arg8[%c0_23, %c0_24] : memref<16x32xbf16, #tpu.memory_space<vmem>>, vector<16x32xbf16>
    tpu.vector_store %arg8[%c0_23, %c0_24], %51 {strides = array<i32>} : memref<16x32xbf16, #tpu.memory_space<vmem>>, vector<16x32xbf16>,
    return
  }
  func.func @transform_0(%arg0: i32) -> (i32, i32) {
    %c0_i32 = arith.constant 0 : i32
    %c0_i32_0 = arith.constant 0 : i32
    return %arg0, %c0_i32 : i32, i32
  }
  func.func @transform_1(%arg0: i32) -> (i32, i32) {
    %c0_i32 = arith.constant 0 : i32
    %c0_i32_0 = arith.constant 0 : i32
    %c0_i32_1 = arith.constant 0 : i32
    return %c0_i32, %c0_i32_0 : i32, i32
  }
  func.func @transform_2(%arg0: i32) -> (i32, i32) {
    %c0_i32 = arith.constant 0 : i32
    %c0_i32_0 = arith.constant 0 : i32
    %c0_i32_1 = arith.constant 0 : i32
    return %c0_i32, %c0_i32_0 : i32, i32
  }
  func.func @transform_3(%arg0: i32) -> (i32, i32) {
    %c0_i32 = arith.constant 0 : i32
    %c0_i32_0 = arith.constant 0 : i32
    %c0_i32_1 = arith.constant 0 : i32
    return %c0_i32, %c0_i32_0 : i32, i32
  }
  func.func @transform_4(%arg0: i32) -> (i32, i32) {
    %c0_i32 = arith.constant 0 : i32
    %c0_i32_0 = arith.constant 0 : i32
    %c0_i32_1 = arith.constant 0 : i32
    return %c0_i32, %c0_i32_0 : i32, i32
  }
  func.func @transform_5(%arg0: i32) -> (i32, i32) {
    %c0_i32 = arith.constant 0 : i32
    %c0_i32_0 = arith.constant 0 : i32
    %c0_i32_1 = arith.constant 0 : i32
    return %c0_i32, %c0_i32_0 : i32, i32
  }
  func.func @transform_6(%arg0: i32) -> (i32, i32) {
    %c0_i32 = arith.constant 0 : i32
    %c0_i32_0 = arith.constant 0 : i32
    %c0_i32_1 = arith.constant 0 : i32
    return %c0_i32, %c0_i32_0 : i32, i32
  }
  func.func @transform_7(%arg0: i32) -> (i32, i32) {
    %c0_i32 = arith.constant 0 : i32
    %c0_i32_0 = arith.constant 0 : i32
    return %arg0, %c0_i32 : i32, i32
  }
}

module attributes {stable_mosaic.version = 11 : i64} {
  func.func @_pool_re_kernel(%arg0: memref<2x32xbf16, #tpu.memory_space<vmem>>, %arg1: memref<32x32xbf16, #tpu.memory_space<vmem>>, %arg2: memref<1x32xf32, #tpu.memory_space<vmem>>, %arg3: memref<32x128xbf16, #tpu.memory_space<vmem>>, %arg4: memref<1x128xf32, #tpu.memory_space<vmem>>, %arg5: memref<2x128xf32, #tpu.memory_space<vmem>>) attributes {dimension_semantics = [], scalar_prefetch = 0 : i64, scratch_operands = 0 : i64, tpu.core_type = #tpu.core_type<tc>} {
    %c0 = arith.constant 0 : index
    %c0_0 = arith.constant 0 : index
    %0 = vector.load %arg0[%c0, %c0_0] : memref<2x32xbf16, #tpu.memory_space<vmem>>, vector<2x32xbf16>
    %c0_1 = arith.constant 0 : index
    %c0_2 = arith.constant 0 : index
    %1 = vector.load %arg1[%c0_1, %c0_2] : memref<32x32xbf16, #tpu.memory_space<vmem>>, vector<32x32xbf16>
    %cst = arith.constant dense<0.000000e+00> : vector<2x32xf32>
    %2 = tpu.matmul %0, %1, %cst {dimension_numbers = #tpu.dot_dimension_numbers<[1], [0], [0], [1], [0, 0, 1, 1], [], []>} : vector<2x32xbf16>, vector<32x32xbf16>, vector<2x32xf32> -> vector<2x32xf32>
    %c0_3 = arith.constant 0 : index
    %c0_4 = arith.constant 0 : index
    %3 = vector.load %arg2[%c0_3, %c0_4] : memref<1x32xf32, #tpu.memory_space<vmem>>, vector<1x32xf32>
    %4 = vector.broadcast %3 : vector<1x32xf32> to vector<2x32xf32>
    %5 = arith.addf %2, %4 : vector<2x32xf32>
    %6 = math.tanh %5 : vector<2x32xf32>
    %7 = arith.truncf %6 : vector<2x32xf32> to vector<2x32xbf16>
    %c0_5 = arith.constant 0 : index
    %c0_6 = arith.constant 0 : index
    %8 = vector.load %arg3[%c0_5, %c0_6] : memref<32x128xbf16, #tpu.memory_space<vmem>>, vector<32x128xbf16>
    %cst_7 = arith.constant dense<0.000000e+00> : vector<2x128xf32>
    %9 = tpu.matmul %7, %8, %cst_7 {dimension_numbers = #tpu.dot_dimension_numbers<[1], [0], [0], [1], [0, 0, 1, 1], [], []>} : vector<2x32xbf16>, vector<32x128xbf16>, vector<2x128xf32> -> vector<2x128xf32>
    %c0_8 = arith.constant 0 : index
    %c0_9 = arith.constant 0 : index
    %10 = vector.load %arg4[%c0_8, %c0_9] : memref<1x128xf32, #tpu.memory_space<vmem>>, vector<1x128xf32>
    %11 = vector.broadcast %10 : vector<1x128xf32> to vector<2x128xf32>
    %12 = arith.addf %9, %11 : vector<2x128xf32>
    %c0_10 = arith.constant 0 : index
    %c0_11 = arith.constant 0 : index
    %13 = vector.load %arg5[%c0_10, %c0_11] : memref<2x128xf32, #tpu.memory_space<vmem>>, vector<2x128xf32>
    tpu.vector_store %arg5[%c0_10, %c0_11], %12 {strides = array<i32>} : memref<2x128xf32, #tpu.memory_space<vmem>>, vector<2x128xf32>,
    return
  }
}

</mosaic_0001>

<llo_original>
// kernel: ner_re_forward.12
$region0: #{ner_re_forward.12}
  #allocation0 [shape = 'u32[]', space=smem, size = 0x4, offset = 0x4, fixed_abs, tag = 'smem constant byte address 0x4 - core index']
  #allocation1 [shape = 'u32[144,128]{1,0:T(1,128)}', space=vmem, size = 0x12000, scoped, tag = 'internal scratch']
  %s0 = inlined_call_operand.vmem [shape: bf16[16,32], index: 0, kind: input, shape index: {}]
  %s1 = inlined_call_operand.vmem [shape: bf16[32,128], index: 1, kind: input, shape index: {}]
  %s2 = inlined_call_operand.vmem [shape: f32[1,128], index: 2, kind: input, shape index: {}]
  %s3 = inlined_call_operand.vmem [shape: f32[16,128], index: 3, kind: output, shape index: {}]
  %s4 = sld [smem:[#allocation0]]
  $region22: #{ner_re_forward.12} parent=0
    _
  %s6 = ssub.s32 1, %s4
  %s7 = scalar_select 0, %s6, %s4
  // Predicated region
  $region2: #{ner_re_forward.12} parent=0 // pred_check
    _
  $region3: #{ner_re_forward.12} parent=0 // pred_check_branch
    %9 = sbr.rel (0) target = $region5
  $region4: #{ner_re_forward.12} parent=0 // pred_region
    _
  $region5: #{ner_re_forward.12} parent=0 // pred_fallthru
    _
  // Predicated region
  $region6: #{ner_re_forward.12} parent=0 // pred_check
    _
  $region7: #{ner_re_forward.12} parent=0 // pred_check_branch
    %11 = sbr.rel (0) target = $region9
  $region8: #{ner_re_forward.12} parent=0 // pred_region
    _
  $region9: #{ner_re_forward.12} parent=0 // pred_fallthru
    _
  // Predicated region
  $region10: #{ner_re_forward.12} parent=0 // pred_check
    _
  $region11: #{ner_re_forward.12} parent=0 // pred_check_branch
    %13 = sbr.rel (0) target = $region13
  $region12: #{ner_re_forward.12} parent=0 // pred_region
    _
  $region13: #{ner_re_forward.12} parent=0 // pred_fallthru
    _
  %v15 = vld [vmem:[%s0] sm:$0xf]
  %v16 = vld [vmem:[%s0 + $0x4] sm:$0xf]
  %v17 = vld [vmem:[%s1] sm:$0xf]
  %v18 = vld [vmem:[%s1 + $0x4] sm:$0xf]
  %v19 = vld [vmem:[%s1 + $0x8] sm:$0xf]
  %v20 = vld [vmem:[%s1 + $0xc] sm:$0xf]
  %v21 = vld [vmem:[%s2] sm:$0x1]
  %v23 = vlaneseq
  %v24 = vshrl.u32 %v23, 7
  %v25 = vsub.s32 0, %v24
  %v26 = vrot.slane %v21, %v25
  %v30 = vunpack.c.l.b16 %v15
  %v31 = vunpack.c.l.b16 %v16
  %v32 = vpack.c.b16 %v31, %v30
  %v37 = vunpack.c.l.b16 %v17
  %v38 = vunpack.c.l.b16 %v18
  %v39 = vunpack.c.l.b16 %v19
  %v40 = vunpack.c.l.b16 %v20
  %v41 = vpack.c.b16 %v38, %v37
  %v42 = vpack.c.b16 %v40, %v39
  %vm45 = vcmask 261120
  %v47 = vsel %vm45, %v32, 0
  %49 = vmatprep.subr.bf16.mxu0 0
  %50 = vmatpush1.bf16.msra.mxu0 %v41
  %51 = vmatprep.subr.bf16.mxu0 0
  %52 = vmatpush1.bf16.msra.mxu0 %v42
  %53 = vmatprep.subr.bf16.mxu0 0
  %54 = vmatpush1.bf16.msra.mxu0 0
  %55 = vmatprep.subr.bf16.mxu0 0
  %56 = vmatpush1.bf16.msra.mxu0 0
  %57 = vmatprep.subr.bf16.mxu0 0
  %58 = vmatpush1.bf16.msra.mxu0 0
  %59 = vmatprep.subr.bf16.mxu0 0
  %60 = vmatpush1.bf16.msra.mxu0 0
  %61 = vmatprep.subr.bf16.mxu0 0
  %62 = vmatpush1.bf16.msra.mxu0 0
  %63 = vmatprep.subr.bf16.mxu0 0
  %64 = vmatpush1.bf16.msra.mxu0 0
  %65 = vmatprep.subr.bf16.mxu0 0
  %66 = vmatpush1.bf16.msra.mxu0 0
  %67 = vmatprep.subr.bf16.mxu0 0
  %68 = vmatpush1.bf16.msra.mxu0 0
  %69 = vmatprep.subr.bf16.mxu0 0
  %70 = vmatpush1.bf16.msra.mxu0 0
  %71 = vmatprep.subr.bf16.mxu0 0
  %72 = vmatpush1.bf16.msra.mxu0 0
  %73 = vmatprep.subr.bf16.mxu0 0
  %74 = vmatpush1.bf16.msra.mxu0 0
  %75 = vmatprep.subr.bf16.mxu0 0
  %76 = vmatpush1.bf16.msra.mxu0 0
  %77 = vmatprep.subr.bf16.mxu0 0
  %78 = vmatpush1.bf16.msra.mxu0 0
  %79 = vmatprep.subr.bf16.mxu0 0
  %80 = vmatpush1.bf16.msra.mxu0 0
  %81 = vmatprep.mubr.bf16.mxu0 0
  %82 = vmatmul.mubr.bf16.gmra.mrb[0].mxu0 %v47
  %v83 = vpop.f32.mrb[0].mxu0
  %v84 = vadd.f32 %v26, %v83
  %v85 = vpop.f32.mrb[0].mxu0
  %v86 = vpop.f32.mrb[0].mxu0
  %v87 = vadd.f32 %v26, %v86
  %v88 = vpop.f32.mrb[0].mxu0
  %89 = vdwg.mxu0
  %90 = vst [vmem:[%s3] sm:$0xff] %v84
  %91 = vst [vmem:[%s3 + $0x8] sm:$0xff] %v87
  // Predicated region
  $region14: #{ner_re_forward.12} parent=0 // pred_check
    _
  $region15: #{ner_re_forward.12} parent=0 // pred_check_branch
    %93 = sbr.rel (0) target = $region17
  $region16: #{ner_re_forward.12} parent=0 // pred_region
    _
  $region17: #{ner_re_forward.12} parent=0 // pred_fallthru
    _
  // Predicated region
  $region18: #{ner_re_forward.12} parent=0 // pred_check
    _
  $region19: #{ner_re_forward.12} parent=0 // pred_check_branch
    %95 = sbr.rel (0) target = $region21
  $region20: #{ner_re_forward.12} parent=0 // pred_region
    _
  $region21: #{ner_re_forward.12} parent=0 // pred_fallthru
    _

// kernel: ner_re_forward.7
$region0: #{ner_re_forward.7}
  #allocation0 [shape = 'u32[]', space=smem, size = 0x4, offset = 0x4, fixed_abs, tag = 'smem constant byte address 0x4 - core index']
  #allocation1 [shape = 'u32[144,128]{1,0:T(1,128)}', space=vmem, size = 0x12000, scoped, tag = 'internal scratch']
  %s0 = inlined_call_operand.vmem [shape: f32[16,32], index: 0, kind: input, shape index: {}]
  %s1 = inlined_call_operand.vmem [shape: f32[1,32], index: 1, kind: input, shape index: {}]
  %s2 = inlined_call_operand.vmem [shape: f32[1,32], index: 2, kind: input, shape index: {}]
  %s3 = inlined_call_operand.vmem [shape: bf16[16,32], index: 3, kind: output, shape index: {}]
  %s4 = sld [smem:[#allocation0]]
  $region22: #{ner_re_forward.7} parent=0
    _
  %s6 = ssub.s32 1, %s4
  %s7 = scalar_select 0, %s6, %s4
  // Predicated region
  $region2: #{ner_re_forward.7} parent=0 // pred_check
    _
  $region3: #{ner_re_forward.7} parent=0 // pred_check_branch
    %9 = sbr.rel (0) target = $region5
  $region4: #{ner_re_forward.7} parent=0 // pred_region
    _
  $region5: #{ner_re_forward.7} parent=0 // pred_fallthru
    _
  // Predicated region
  $region6: #{ner_re_forward.7} parent=0 // pred_check
    _
  $region7: #{ner_re_forward.7} parent=0 // pred_check_branch
    %11 = sbr.rel (0) target = $region9
  $region8: #{ner_re_forward.7} parent=0 // pred_region
    _
  $region9: #{ner_re_forward.7} parent=0 // pred_fallthru
    _
  // Predicated region
  $region10: #{ner_re_forward.7} parent=0 // pred_check
    _
  $region11: #{ner_re_forward.7} parent=0 // pred_check_branch
    %13 = sbr.rel (0) target = $region13
  $region12: #{ner_re_forward.7} parent=0 // pred_region
    _
  $region13: #{ner_re_forward.7} parent=0 // pred_fallthru
    _
  %v14 = vld [vmem:[%s0] sm:$0xff]
  %v15 = vld [vmem:[%s0 + $0x8] sm:$0xff]
  %vm16 = vcmask 261120
  %v17 = vsel %vm16, %v14, 0.0
  %18 = vadd.xlane.f32.xlu0 %v17
  %v19 = vpop.xlane.xlu0 %18
  %v20 = vsel %vm16, %v15, 0.0
  %21 = vadd.xlane.f32.xlu0 %v20
  %v22 = vpop.xlane.xlu0 %21
  %v23 = vrcp.pop 32.0
  %v24 = vmul.f32 %v19, %v23
  %v25 = vmul.f32 %v22, %v23
  %v26 = vsub.f32 %v14, %v24
  %v27 = vsub.f32 %v15, %v25
  %v28 = vmul.f32 %v26, %v26
  %v29 = vmul.f32 %v27, %v27
  %v30 = vsel %vm16, %v28, 0.0
  %31 = vadd.xlane.f32.xlu0 %v30
  %v32 = vpop.xlane.xlu0 %31
  %v33 = vsel %vm16, %v29, 0.0
  %34 = vadd.xlane.f32.xlu0 %v33
  %v35 = vpop.xlane.xlu0 %34
  %v36 = vmul.f32 %v32, %v23
  %v37 = vmul.f32 %v35, %v23
  %v38 = vadd.f32 %v36, 1e-12
  %v39 = vadd.f32 %v37, 1e-12
  %v40 = vrsqrt.pop %v38
  %v41 = vrsqrt.pop %v39
  %v42 = vmul.f32 %v26, %v40
  %v43 = vmul.f32 %v27, %v41
  %v44 = vld [vmem:[%s1] sm:$0x1]
  %v46 = vlaneseq
  %v47 = vshrl.u32 %v46, 7
  %v48 = vsub.s32 0, %v47
  %v49 = vrot.slane %v44, %v48
  %v51 = vmul.f32 %v42, %v49
  %v52 = vmul.f32 %v43, %v49
  %v53 = vld [vmem:[%s2] sm:$0x1]
  %v55 = vlaneseq
  %v56 = vshrl.u32 %v55, 7
  %v57 = vsub.s32 0, %v56
  %v58 = vrot.slane %v53, %v57
  %v60 = vadd.f32 %v51, %v58
  %v61 = vadd.f32 %v52, %v58
  %v62 = vpack.c.bf16 %v61, %v60
  %v64 = vunpack.c.l.b16 %v62
  %v65 = vunpack.c.h.b16 %v62
  %v66 = vpack.c.b16 %v64, %v64
  %v67 = vpack.c.b16 %v65, %v65
  %vm70 = vcmask 257024
  %71 = vst.msk [vmem:[%s3] sm:$0xf] %vm70, %v66
  %72 = vst.msk [vmem:[%s3 + $0x4] sm:$0xf] %vm70, %v67
  // Predicated region
  $region14: #{ner_re_forward.7} parent=0 // pred_check
    _
  $region15: #{ner_re_forward.7} parent=0 // pred_check_branch
    %74 = sbr.rel (0) target = $region17
  $region16: #{ner_re_forward.7} parent=0 // pred_region
    _
  $region17: #{ner_re_forward.7} parent=0 // pred_fallthru
    _
  // Predicated region
  $region18: #{ner_re_forward.7} parent=0 // pred_check
    _
  $region19: #{ner_re_forward.7} parent=0 // pred_check_branch
    %76 = sbr.rel (0) target = $region21
  $region20: #{ner_re_forward.7} parent=0 // pred_region
    _
  $region21: #{ner_re_forward.7} parent=0 // pred_fallthru
    _

// kernel: ner_re_forward.8
$region0: #{ner_re_forward.8}
  #allocation0 [shape = 'u32[]', space=smem, size = 0x4, offset = 0x4, fixed_abs, tag = 'smem constant byte address 0x4 - core index']
  #allocation1 [shape = 'u32[144,128]{1,0:T(1,128)}', space=vmem, size = 0x12000, scoped, tag = 'internal scratch']
  %s0 = inlined_call_operand.vmem [shape: bf16[16,32], index: 0, kind: input, shape index: {}]
  %s1 = inlined_call_operand.vmem [shape: f32[2,1,8], index: 1, kind: input, shape index: {}]
  %s2 = inlined_call_operand.vmem [shape: bf16[32,96], index: 2, kind: input, shape index: {}]
  %s3 = inlined_call_operand.vmem [shape: f32[1,96], index: 3, kind: input, shape index: {}]
  %s4 = inlined_call_operand.vmem [shape: bf16[32,32], index: 4, kind: input, shape index: {}]
  %s5 = inlined_call_operand.vmem [shape: f32[1,32], index: 5, kind: input, shape index: {}]
  %s6 = inlined_call_operand.vmem [shape: f32[1,32], index: 6, kind: input, shape index: {}]
  %s7 = inlined_call_operand.vmem [shape: f32[1,32], index: 7, kind: input, shape index: {}]
  %s8 = inlined_call_operand.vmem [shape: bf16[16,32], index: 8, kind: output, shape index: {}]
  %s9 = sld [smem:[#allocation0]]
  $region65: #{ner_re_forward.8} parent=0
    _
  %s11 = ssub.s32 1, %s9
  %s12 = scalar_select 0, %s11, %s9
  loop: start=0, step=1, limit=4
  $region2: #{ner_re_forward.8} parent=0 // loop_pre_header
    _
  $region3: #{ner_re_forward.8} parent=0 // loop_header
    %s14 = sphi 0, %s18
    %p15 = scmp.ge.s32.totalorder %s14, 4
    %s24 = sphi 0, %s26
    %s27 = sphi 0, %s24
    %s28 = sphi 0, %s27
    %s44 = sphi 0, %s28
    %s50 = sphi 0, %s52
    %s53 = sphi 0, %s50
    %s54 = sphi 0, %s53
    %s70 = sphi 0, %s54
    %s74 = sphi 0, %s74
    %s76 = sphi 0, %s74
    %s77 = sphi 0, %s76
    %s91 = sphi 0, %s77
    %s95 = sphi 0, %s95
    %s97 = sphi 0, %s95
    %s98 = sphi 0, %s97
    %s112 = sphi 0, %s98
    %s116 = sphi 0, %s116
    %s118 = sphi 0, %s116
    %s119 = sphi 0, %s118
    %s133 = sphi 0, %s119
    %s137 = sphi 0, %s137
    %s139 = sphi 0, %s137
    %s140 = sphi 0, %s139
    %s154 = sphi 0, %s140
    %s158 = sphi 0, %s158
    %s160 = sphi 0, %s158
    %s161 = sphi 0, %s160
    %s175 = sphi 0, %s161
    %s179 = sphi 0, %s179
    %s181 = sphi 0, %s179
    %s182 = sphi 0, %s181
    %s196 = sphi 0, %s182
    %s202 = sphi 0, %s204
    %s205 = sphi 0, %s202
    %s206 = sphi 0, %s205
    %s222 = sphi 0, %s206
  $region4: #{ner_re_forward.8} parent=0 // loop_header_branch
    %17 = sbr.rel (%p15) target = $region8
  $region5: #{ner_re_forward.8} parent=0 // loop_body
    %s19 = ssub.s32 %s14, 1
    %s20 = ssub.s32 %s14, 2
    %s21 = sadd.s32 %s14, 1
    %s22 = ssub.s32 %s14, %s21
    %p23 = scmp.eq.s32.totalorder %s22, 0
    %s25 = sadd.s32 %s24, 1
    %s26 = scalar_select %p23, %s24, %s25
    %p29 = pneg %p23
    %p30 = scmp.eq.s32.totalorder %s14, 1
    %p31 = por %p29, %p30
    %p32 = scmp.ne.s32.totalorder %s24, %s27
    %p33 = scmp.eq.s32.totalorder %s14, 0
    %p34 = por %p32, %p33
    %p35 = scmp.ne.s32.totalorder %s24, %s27
    %p36 = scmp.eq.s32.totalorder %s19, 1
    %p37 = por %p35, %p36
    %p38 = scmp.ne.s32.totalorder %s27, %s28
    %p39 = scmp.eq.s32.totalorder %s19, 0
    %p40 = por %p38, %p39
    %p41 = scmp.ne.s32.totalorder %s27, %s28
    %p42 = scmp.eq.s32.totalorder %s20, 1
    %p43 = por %p41, %p42
    %p45 = scmp.ne.s32.totalorder %s28, %s44
    %p46 = scmp.eq.s32.totalorder %s20, 0
    %p47 = por %p45, %p46
    %s48 = ssub.s32 %s14, %s21
    %p49 = scmp.eq.s32.totalorder %s48, 0
    %s51 = sadd.s32 %s50, 1
    %s52 = scalar_select %p49, %s50, %s51
    %p55 = pneg %p49
    %p56 = scmp.eq.s32.totalorder %s14, 1
    %p57 = por %p55, %p56
    %p58 = scmp.ne.s32.totalorder %s50, %s53
    %p59 = scmp.eq.s32.totalorder %s14, 0
    %p60 = por %p58, %p59
    %p61 = scmp.ne.s32.totalorder %s50, %s53
    %p62 = scmp.eq.s32.totalorder %s19, 1
    %p63 = por %p61, %p62
    %p64 = scmp.ne.s32.totalorder %s53, %s54
    %p65 = scmp.eq.s32.totalorder %s19, 0
    %p66 = por %p64, %p65
    %p67 = scmp.ne.s32.totalorder %s53, %s54
    %p68 = scmp.eq.s32.totalorder %s20, 1
    %p69 = por %p67, %p68
    %p71 = scmp.ne.s32.totalorder %s54, %s70
    %p72 = scmp.eq.s32.totalorder %s20, 0
    %p73 = por %p71, %p72
    %s75 = sadd.s32 %s74, 1
    %p78 = scmp.eq.s32.totalorder %s14, 1
    %p79 = scmp.ne.s32.totalorder %s74, %s76
    %p80 = scmp.eq.s32.totalorder %s14, 0
    %p81 = por %p79, %p80
    %p82 = scmp.ne.s32.totalorder %s74, %s76
    %p83 = scmp.eq.s32.totalorder %s19, 1
    %p84 = por %p82, %p83
    %p85 = scmp.ne.s32.totalorder %s76, %s77
    %p86 = scmp.eq.s32.totalorder %s19, 0
    %p87 = por %p85, %p86
    %p88 = scmp.ne.s32.totalorder %s76, %s77
    %p89 = scmp.eq.s32.totalorder %s20, 1
    %p90 = por %p88, %p89
    %p92 = scmp.ne.s32.totalorder %s77, %s91
    %p93 = scmp.eq.s32.totalorder %s20, 0
    %p94 = por %p92, %p93
    %s96 = sadd.s32 %s95, 1
    %p99 = scmp.eq.s32.totalorder %s14, 1
    %p100 = scmp.ne.s32.totalorder %s95, %s97
    %p101 = scmp.eq.s32.totalorder %s14, 0
    %p102 = por %p100, %p101
    %p103 = scmp.ne.s32.totalorder %s95, %s97
    %p104 = scmp.eq.s32.totalorder %s19, 1
    %p105 = por %p103, %p104
    %p106 = scmp.ne.s32.totalorder %s97, %s98
    %p107 = scmp.eq.s32.totalorder %s19, 0
    %p108 = por %p106, %p107
    %p109 = scmp.ne.s32.totalorder %s97, %s98
    %p110 = scmp.eq.s32.totalorder %s20, 1
    %p111 = por %p109, %p110
    %p113 = scmp.ne.s32.totalorder %s98, %s112
    %p114 = scmp.eq.s32.totalorder %s20, 0
    %p115 = por %p113, %p114
    %s117 = sadd.s32 %s116, 1
    %p120 = scmp.eq.s32.totalorder %s14, 1
    %p121 = scmp.ne.s32.totalorder %s116, %s118
    %p122 = scmp.eq.s32.totalorder %s14, 0
    %p123 = por %p121, %p122
    %p124 = scmp.ne.s32.totalorder %s116, %s118
    %p125 = scmp.eq.s32.totalorder %s19, 1
    %p126 = por %p124, %p125
    %p127 = scmp.ne.s32.totalorder %s118, %s119
    %p128 = scmp.eq.s32.totalorder %s19, 0
    %p129 = por %p127, %p128
    %p130 = scmp.ne.s32.totalorder %s118, %s119
    %p131 = scmp.eq.s32.totalorder %s20, 1
    %p132 = por %p130, %p131
    %p134 = scmp.ne.s32.totalorder %s119, %s133
    %p135 = scmp.eq.s32.totalorder %s20, 0
    %p136 = por %p134, %p135
    %s138 = sadd.s32 %s137, 1
    %p141 = scmp.eq.s32.totalorder %s14, 1
    %p142 = scmp.ne.s32.totalorder %s137, %s139
    %p143 = scmp.eq.s32.totalorder %s14, 0
    %p144 = por %p142, %p143
    %p145 = scmp.ne.s32.totalorder %s137, %s139
    %p146 = scmp.eq.s32.totalorder %s19, 1
    %p147 = por %p145, %p146
    %p148 = scmp.ne.s32.totalorder %s139, %s140
    %p149 = scmp.eq.s32.totalorder %s19, 0
    %p150 = por %p148, %p149
    %p151 = scmp.ne.s32.totalorder %s139, %s140
    %p152 = scmp.eq.s32.totalorder %s20, 1
    %p153 = por %p151, %p152
    %p155 = scmp.ne.s32.totalorder %s140, %s154
    %p156 = scmp.eq.s32.totalorder %s20, 0
    %p157 = por %p155, %p156
    %s159 = sadd.s32 %s158, 1
    %p162 = scmp.eq.s32.totalorder %s14, 1
    %p163 = scmp.ne.s32.totalorder %s158, %s160
    %p164 = scmp.eq.s32.totalorder %s14, 0
    %p165 = por %p163, %p164
    %p166 = scmp.ne.s32.totalorder %s158, %s160
    %p167 = scmp.eq.s32.totalorder %s19, 1
    %p168 = por %p166, %p167
    %p169 = scmp.ne.s32.totalorder %s160, %s161
    %p170 = scmp.eq.s32.totalorder %s19, 0
    %p171 = por %p169, %p170
    %p172 = scmp.ne.s32.totalorder %s160, %s161
    %p173 = scmp.eq.s32.totalorder %s20, 1
    %p174 = por %p172, %p173
    %p176 = scmp.ne.s32.totalorder %s161, %s175
    %p177 = scmp.eq.s32.totalorder %s20, 0
    %p178 = por %p176, %p177
    %s180 = sadd.s32 %s179, 1
    %p183 = scmp.eq.s32.totalorder %s14, 1
    %p184 = scmp.ne.s32.totalorder %s179, %s181
    %p185 = scmp.eq.s32.totalorder %s14, 0
    %p186 = por %p184, %p185
    %p187 = scmp.ne.s32.totalorder %s179, %s181
    %p188 = scmp.eq.s32.totalorder %s19, 1
    %p189 = por %p187, %p188
    %p190 = scmp.ne.s32.totalorder %s181, %s182
    %p191 = scmp.eq.s32.totalorder %s19, 0
    %p192 = por %p190, %p191
    %p193 = scmp.ne.s32.totalorder %s181, %s182
    %p194 = scmp.eq.s32.totalorder %s20, 1
    %p195 = por %p193, %p194
    %p197 = scmp.ne.s32.totalorder %s182, %s196
    %p198 = scmp.eq.s32.totalorder %s20, 0
    %p199 = por %p197, %p198
    %s200 = ssub.s32 %s14, %s21
    %p201 = scmp.eq.s32.totalorder %s200, 0
    %s203 = sadd.s32 %s202, 1
    %s204 = scalar_select %p201, %s202, %s203
    %p207 = pneg %p201
    %p208 = scmp.eq.s32.totalorder %s14, 1
    %p209 = por %p207, %p208
    %p210 = scmp.ne.s32.totalorder %s202, %s205
    %p211 = scmp.eq.s32.totalorder %s14, 0
    %p212 = por %p210, %p211
    %p213 = scmp.ne.s32.totalorder %s202, %s205
    %p214 = scmp.eq.s32.totalorder %s19, 1
    %p215 = por %p213, %p214
    %p216 = scmp.ne.s32.totalorder %s205, %s206
    %p217 = scmp.eq.s32.totalorder %s19, 0
    %p218 = por %p216, %p217
    %p219 = scmp.ne.s32.totalorder %s205, %s206
    %p220 = scmp.eq.s32.totalorder %s20, 1
    %p221 = por %p219, %p220
    %p223 = scmp.ne.s32.totalorder %s206, %s222
    %p224 = scmp.eq.s32.totalorder %s20, 0
    %p225 = por %p223, %p224
    %p226 = scmp.le.s32.totalorder 1, %s14
    %p227 = scmp.lt.s32.totalorder %s14, 3
    %p228 = pnand %p226, %p227
    %p229 = pneg %p228
    // Predicated region
    $region9: #{ner_re_forward.8} parent=5 // pred_check
      _
    $region10: #{ner_re_forward.8} parent=5 // pred_check_branch
      %231 = sbr.rel (%p228) target = $region12
    $region11: #{ner_re_forward.8} parent=5 // pred_region
      %s232 = ssub.s32 %s14, 1
      // Predicated region
      $region13: #{ner_re_forward.8} parent=11 // pred_check
        %p233 = pneg %p87
      $region14: #{ner_re_forward.8} parent=11 // pred_check_branch
        %235 = sbr.rel (%p233) target = $region16
      $region15: #{ner_re_forward.8} parent=11 // pred_region
        _
      $region16: #{ner_re_forward.8} parent=11 // pred_fallthru
        _
      // Predicated region
      $region17: #{ner_re_forward.8} parent=11 // pred_check
        %p236 = pneg %p108
      $region18: #{ner_re_forward.8} parent=11 // pred_check_branch
        %238 = sbr.rel (%p236) target = $region20
      $region19: #{ner_re_forward.8} parent=11 // pred_region
        _
      $region20: #{ner_re_forward.8} parent=11 // pred_fallthru
        _
      // Predicated region
      $region21: #{ner_re_forward.8} parent=11 // pred_check
        %p239 = pneg %p129
      $region22: #{ner_re_forward.8} parent=11 // pred_check_branch
        %241 = sbr.rel (%p239) target = $region24
      $region23: #{ner_re_forward.8} parent=11 // pred_region
        _
      $region24: #{ner_re_forward.8} parent=11 // pred_fallthru
        _
      // Predicated region
      $region25: #{ner_re_forward.8} parent=11 // pred_check
        %p242 = pneg %p150
      $region26: #{ner_re_forward.8} parent=11 // pred_check_branch
        %244 = sbr.rel (%p242) target = $region28
      $region27: #{ner_re_forward.8} parent=11 // pred_region
        _
      $region28: #{ner_re_forward.8} parent=11 // pred_fallthru
        _
      // Predicated region
      $region29: #{ner_re_forward.8} parent=11 // pred_check
        %p245 = pneg %p171
      $region30: #{ner_re_forward.8} parent=11 // pred_check_branch
        %247 = sbr.rel (%p245) target = $region32
      $region31: #{ner_re_forward.8} parent=11 // pred_region
        _
      $region32: #{ner_re_forward.8} parent=11 // pred_fallthru
        _
      // Predicated region
      $region33: #{ner_re_forward.8} parent=11 // pred_check
        %p248 = pneg %p192
      $region34: #{ner_re_forward.8} parent=11 // pred_check_branch
        %250 = sbr.rel (%p248) target = $region36
      $region35: #{ner_re_forward.8} parent=11 // pred_region
        _
      $region36: #{ner_re_forward.8} parent=11 // pred_fallthru
        _
    $region12: #{ner_re_forward.8} parent=5 // pred_fallthru
      _
    %p251 = scmp.lt.s32.totalorder %s14, 2
    // Predicated region
    $region37: #{ner_re_forward.8} parent=5 // pred_check
      %p252 = pneg %p251
    $region38: #{ner_re_forward.8} parent=5 // pred_check_branch
      %254 = sbr.rel (%p252) target = $region40
    $region39: #{ner_re_forward.8} parent=5 // pred_region
      // Predicated region
      $region41: #{ner_re_forward.8} parent=39 // pred_check
        %p255 = pneg %p34
      $region42: #{ner_re_forward.8} parent=39 // pred_check_branch
        %257 = sbr.rel (%p255) target = $region44
      $region43: #{ner_re_forward.8} parent=39 // pred_region
        %p258 = scmp.lt.s32.totalorder %s14, 1
        %s259 = scalar_select %p258, %s14, 1
        %s260 = smul.addr %s259, 4
        %s261 = scalar_lea.vmem %s0, %s260
      $region44: #{ner_re_forward.8} parent=39 // pred_fallthru
        _
      // Predicated region
      $region45: #{ner_re_forward.8} parent=39 // pred_check
        %p262 = pneg %p60
      $region46: #{ner_re_forward.8} parent=39 // pred_check_branch
        %264 = sbr.rel (%p262) target = $region48
      $region47: #{ner_re_forward.8} parent=39 // pred_region
        %p265 = scmp.lt.s32.totalorder %s14, 1
        %s266 = scalar_select %p265, %s14, 1
        %s267 = scalar_lea.vmem %s1, %s266
      $region48: #{ner_re_forward.8} parent=39 // pred_fallthru
        _
    $region40: #{ner_re_forward.8} parent=5 // pred_fallthru
      _
    %p268 = scmp.le.s32.totalorder 1, %s14
    %p269 = scmp.lt.s32.totalorder %s14, 3
    %p270 = pnand %p268, %p269
    %p271 = pneg %p270
    // Predicated region
    $region49: #{ner_re_forward.8} parent=5 // pred_check
      _
    $region50: #{ner_re_forward.8} parent=5 // pred_check_branch
      %273 = sbr.rel (%p270) target = $region52
    $region51: #{ner_re_forward.8} parent=5 // pred_region
      %s274 = ssub.s32 %s14, 1
      %p275 = scmp.lt.s32.totalorder %s19, 1
      %s276 = scalar_select %p275, %s19, 1
      %s277 = smul.addr %s276, 4
      %s278 = scalar_lea.vmem %s0, %s277
      %p279 = pneg %p40
      %p280 = pneg %p37
      %p281 = scmp.lt.s32.totalorder %s19, 1
      %s282 = scalar_select %p281, %s19, 1
      %s283 = scalar_lea.vmem %s1, %s282
      %p284 = pneg %p66
      %p285 = pneg %p63
      %p286 = pneg %p87
      %p287 = pneg %p84
      %p288 = pneg %p108
      %p289 = pneg %p105
      %p290 = pneg %p129
      %p291 = pneg %p126
      %p292 = pneg %p150
      %p293 = pneg %p147
      %p294 = pneg %p171
      %p295 = pneg %p168
      %p296 = pneg %p192
      %p297 = pneg %p189
      %p298 = pneg %p218
      %p299 = pneg %p215
      %p300 = scmp.lt.s32.totalorder %s19, 1
      %s301 = scalar_select %p300, %s19, 1
      %s302 = smul.addr %s301, 4
      %s303 = scalar_lea.vmem %s8, %s302
      %p304 = scmp.lt.s32.totalorder %s19, 1
      %s305 = scalar_select %p304, %s19, 1
      %s306 = smul.addr %s305, 4
      %s307 = scalar_lea.vmem %s0, %s306
      %p308 = scmp.lt.s32.totalorder %s19, 1
      %s309 = scalar_select %p308, %s19, 1
      %s310 = scalar_lea.vmem %s1, %s309
      %p311 = scmp.lt.s32.totalorder %s19, 1
      %s312 = scalar_select %p311, %s19, 1
      %s313 = smul.addr %s312, 4
      %s314 = scalar_lea.vmem %s8, %s313
      %v316 = vld [vmem:[%s307] sm:$0xf]
      %v317 = vld [vmem:[%s310] sm:$0x1]
      %v318 = vld [vmem:[%s2] sm:$0xf]
      %v319 = vld [vmem:[%s2 + $0x4] sm:$0xf]
      %v320 = vld [vmem:[%s2 + $0x8] sm:$0xf]
      %v321 = vld [vmem:[%s2 + $0xc] sm:$0xf]
      %v322 = vld [vmem:[%s3] sm:$0x1]
      %v324 = vlaneseq
      %v325 = vshrl.u32 %v324, 7
      %v326 = vsub.s32 0, %v325
      %v327 = vrot.slane %v322, %v326
      %v333 = vunpack.c.l.b16 %v318
      %v334 = vunpack.c.l.b16 %v319
      %v335 = vunpack.c.l.b16 %v320
      %v336 = vunpack.c.l.b16 %v321
      %v337 = vpack.c.b16 %v334, %v333
      %v338 = vpack.c.b16 %v336, %v335
      %vm341 = vcmask 261120
      %v343 = vsel %vm341, %v316, 0
      %345 = vmatprep.subr.bf16.mxu0 0
      %346 = vmatpush1.bf16.msra.mxu0 %v337
      %347 = vmatprep.subr.bf16.mxu0 0
      %348 = vmatpush1.bf16.msra.mxu0 %v338
      %349 = vmatprep.subr.bf16.mxu0 0
      %350 = vmatpush1.bf16.msra.mxu0 0
      %351 = vmatprep.subr.bf16.mxu0 0
      %352 = vmatpush1.bf16.msra.mxu0 0
      %353 = vmatprep.subr.bf16.mxu0 0
      %354 = vmatpush1.bf16.msra.mxu0 0
      %355 = vmatprep.subr.bf16.mxu0 0
      %356 = vmatpush1.bf16.msra.mxu0 0
      %357 = vmatprep.subr.bf16.mxu0 0
      %358 = vmatpush1.bf16.msra.mxu0 0
      %359 = vmatprep.subr.bf16.mxu0 0
      %360 = vmatpush1.bf16.msra.mxu0 0
      %361 = vmatprep.subr.bf16.mxu0 0
      %362 = vmatpush1.bf16.msra.mxu0 0
      %363 = vmatprep.subr.bf16.mxu0 0
      %364 = vmatpush1.bf16.msra.mxu0 0
      %365 = vmatprep.subr.bf16.mxu0 0
      %366 = vmatpush1.bf16.msra.mxu0 0
      %367 = vmatprep.subr.bf16.mxu0 0
      %368 = vmatpush1.bf16.msra.mxu0 0
      %369 = vmatprep.subr.bf16.mxu0 0
      %370 = vmatpush1.bf16.msra.mxu0 0
      %371 = vmatprep.subr.bf16.mxu0 0
      %372 = vmatpush1.bf16.msra.mxu0 0
      %373 = vmatprep.subr.bf16.mxu0 0
      %374 = vmatpush1.bf16.msra.mxu0 0
      %375 = vmatprep.subr.bf16.mxu0 0
      %376 = vmatpush1.bf16.msra.mxu0 0
      %377 = vmatprep.mubr.bf16.mxu0 0
      %378 = vmatmul.mubr.bf16.gmra.mrb[0].mxu0 %v343
      %v379 = vpop.f32.mrb[0].mxu0
      %v380 = vadd.f32 %v327, %v379
      %v381 = vpop.f32.mrb[0].mxu0
      %v382 = vpop.f32.mrb[0].mxu0
      %v383 = vpop.f32.mrb[0].mxu0
      %384 = vdwg.mxu0
      %v385 = vpack.c.bf16 %v380, %v380
      %387 = vrot.lane.b32.xlu0 %v385, 96
      %v388 = vpop.permute.xlu0 %387
      %vm389 = vcmask 130048
      %v391 = vsel %vm389, %v385, 0
      %v394 = vsel %vm389, %v388, 0
      %396 = vmatprep.subr.bf16.mxu0 0
      %397 = vmatpush1.bf16.xpose.msra.mxu0 %v394
      %398 = vmatprep.subr.bf16.mxu0 0
      %399 = vmatpush1.bf16.xpose.msra.mxu0 0
      %400 = vmatprep.subr.bf16.mxu0 0
      %401 = vmatpush1.bf16.xpose.msra.mxu0 0
      %402 = vmatprep.subr.bf16.mxu0 0
      %403 = vmatpush1.bf16.xpose.msra.mxu0 0
      %404 = vmatprep.subr.bf16.mxu0 0
      %405 = vmatpush1.bf16.xpose.msra.mxu0 0
      %406 = vmatprep.subr.bf16.mxu0 0
      %407 = vmatpush1.bf16.xpose.msra.mxu0 0
      %408 = vmatprep.subr.bf16.mxu0 0
      %409 = vmatpush1.bf16.xpose.msra.mxu0 0
      %410 = vmatprep.subr.bf16.mxu0 0
      %411 = vmatpush1.bf16.xpose.msra.mxu0 0
      %412 = vmatprep.subr.bf16.mxu0 0
      %413 = vmatpush1.bf16.xpose.msra.mxu0 0
      %414 = vmatprep.subr.bf16.mxu0 0
      %415 = vmatpush1.bf16.xpose.msra.mxu0 0
      %416 = vmatprep.subr.bf16.mxu0 0
      %417 = vmatpush1.bf16.xpose.msra.mxu0 0
      %418 = vmatprep.subr.bf16.mxu0 0
      %419 = vmatpush1.bf16.xpose.msra.mxu0 0
      %420 = vmatprep.subr.bf16.mxu0 0
      %421 = vmatpush1.bf16.xpose.msra.mxu0 0
      %422 = vmatprep.subr.bf16.mxu0 0
      %423 = vmatpush1.bf16.xpose.msra.mxu0 0
      %424 = vmatprep.subr.bf16.mxu0 0
      %425 = vmatpush1.bf16.xpose.msra.mxu0 0
      %426 = vmatprep.subr.bf16.mxu0 0
      %427 = vmatpush1.bf16.xpose.msra.mxu0 0
      %428 = vmatprep.mubr.bf16.mxu0 0
      %429 = vmatmul.mubr.bf16.gmra.mrb[0].mxu0 %v391
      %v430 = vpop.f32.mrb[0].mxu0
      %v431 = vadd.f32 0.0, %v430
      %v432 = vpop.f32.mrb[0].mxu0
      %v433 = vpop.f32.mrb[0].mxu0
      %v434 = vpop.f32.mrb[0].mxu0
      %435 = vdwg.mxu0
      %v436 = vmul.f32 %v431, 0.25
      %v438 = vlaneseq
      %v439 = vshrl.u32 %v438, 7
      %v440 = vsub.s32 0, %v439
      %v441 = vrot.slane %v317, %v440
      %v443 = vadd.f32 %v436, %v441
      %vm444 = vcmask 64512
      %v445 = vsel %vm444, %v443, -inf
      %446 = vmax.xlane.f32.xlu0 %v445
      %v447 = vpop.xlane.xlu0 %446
      %v448 = vsub.f32 %v443, %v447
      %v449 = vmul.f32 %v448, 1.442695
      %v450 = vpow.pop %v449
      %v451 = vsel %vm444, %v450, 0.0
      %452 = vadd.xlane.f32.xlu0 %v451
      %v453 = vpop.xlane.xlu0 %452
      %v454 = vrcp.pop %v453
      %v455 = vmul.f32 %v450, %v454
      %v456 = vpack.c.bf16 %v455, %v455
      %457 = vrot.lane.b32.xlu0 %v385, 64
      %v458 = vpop.permute.xlu0 %457
      %v460 = vsel %vm444, %v456, 0
      %vm462 = vcmask 1043456
      %v464 = vsel %vm462, %v458, 0
      %466 = vmatprep.subr.bf16.mxu0 0
      %467 = vmatpush1.bf16.msra.mxu0 %v464
      %468 = vmatprep.subr.bf16.mxu0 0
      %469 = vmatpush1.bf16.msra.mxu0 0
      %470 = vmatprep.subr.bf16.mxu0 0
      %471 = vmatpush1.bf16.msra.mxu0 0
      %472 = vmatprep.subr.bf16.mxu0 0
      %473 = vmatpush1.bf16.msra.mxu0 0
      %474 = vmatprep.subr.bf16.mxu0 0
      %475 = vmatpush1.bf16.msra.mxu0 0
      %476 = vmatprep.subr.bf16.mxu0 0
      %477 = vmatpush1.bf16.msra.mxu0 0
      %478 = vmatprep.subr.bf16.mxu0 0
      %479 = vmatpush1.bf16.msra.mxu0 0
      %480 = vmatprep.subr.bf16.mxu0 0
      %481 = vmatpush1.bf16.msra.mxu0 0
      %482 = vmatprep.subr.bf16.mxu0 0
      %483 = vmatpush1.bf16.msra.mxu0 0
      %484 = vmatprep.subr.bf16.mxu0 0
      %485 = vmatpush1.bf16.msra.mxu0 0
      %486 = vmatprep.subr.bf16.mxu0 0
      %487 = vmatpush1.bf16.msra.mxu0 0
      %488 = vmatprep.subr.bf16.mxu0 0
      %489 = vmatpush1.bf16.msra.mxu0 0
      %490 = vmatprep.subr.bf16.mxu0 0
      %491 = vmatpush1.bf16.msra.mxu0 0
      %492 = vmatprep.subr.bf16.mxu0 0
      %493 = vmatpush1.bf16.msra.mxu0 0
      %494 = vmatprep.subr.bf16.mxu0 0
      %495 = vmatpush1.bf16.msra.mxu0 0
      %496 = vmatprep.subr.bf16.mxu0 0
      %497 = vmatpush1.bf16.msra.mxu0 0
      %498 = vmatprep.mubr.bf16.mxu0 0
      %499 = vmatmul.mubr.bf16.gmra.mrb[0].mxu0 %v460
      %v500 = vpop.f32.mrb[0].mxu0
      %v501 = vadd.f32 0.0, %v500
      %v502 = vpop.f32.mrb[0].mxu0
      %v503 = vpop.f32.mrb[0].mxu0
      %v504 = vpop.f32.mrb[0].mxu0
      %505 = vdwg.mxu0
      %v506 = vpack.c.bf16 %v501, %v501
      %v507 = vld [vmem:[%s4] sm:$0xf]
      %v508 = vld [vmem:[%s4 + $0x4] sm:$0xf]
      %509 = vrot.lane.b32.xlu0 %v385, 112
      %v510 = vpop.permute.xlu0 %509
      %511 = vrot.lane.b32.xlu0 %v385, 80
      %v512 = vpop.permute.xlu0 %511
      %v514 = vsel %vm389, %v510, 0
      %v517 = vsel %vm389, %v512, 0
      %519 = vmatprep.subr.bf16.mxu0 0
      %520 = vmatpush1.bf16.xpose.msra.mxu0 %v517
      %521 = vmatprep.subr.bf16.mxu0 0
      %522 = vmatpush1.bf16.xpose.msra.mxu0 0
      %523 = vmatprep.subr.bf16.mxu0 0
      %524 = vmatpush1.bf16.xpose.msra.mxu0 0
      %525 = vmatprep.subr.bf16.mxu0 0
      %526 = vmatpush1.bf16.xpose.msra.mxu0 0
      %527 = vmatprep.subr.bf16.mxu0 0
      %528 = vmatpush1.bf16.xpose.msra.mxu0 0
      %529 = vmatprep.subr.bf16.mxu0 0
      %530 = vmatpush1.bf16.xpose.msra.mxu0 0
      %531 = vmatprep.subr.bf16.mxu0 0
      %532 = vmatpush1.bf16.xpose.msra.mxu0 0
      %533 = vmatprep.subr.bf16.mxu0 0
      %534 = vmatpush1.bf16.xpose.msra.mxu0 0
      %535 = vmatprep.subr.bf16.mxu0 0
      %536 = vmatpush1.bf16.xpose.msra.mxu0 0
      %537 = vmatprep.subr.bf16.mxu0 0
      %538 = vmatpush1.bf16.xpose.msra.mxu0 0
      %539 = vmatprep.subr.bf16.mxu0 0
      %540 = vmatpush1.bf16.xpose.msra.mxu0 0
      %541 = vmatprep.subr.bf16.mxu0 0
      %542 = vmatpush1.bf16.xpose.msra.mxu0 0
      %543 = vmatprep.subr.bf16.mxu0 0
      %544 = vmatpush1.bf16.xpose.msra.mxu0 0
      %545 = vmatprep.subr.bf16.mxu0 0
      %546 = vmatpush1.bf16.xpose.msra.mxu0 0
      %547 = vmatprep.subr.bf16.mxu0 0
      %548 = vmatpush1.bf16.xpose.msra.mxu0 0
      %549 = vmatprep.subr.bf16.mxu0 0
      %550 = vmatpush1.bf16.xpose.msra.mxu0 0
      %551 = vmatprep.mubr.bf16.mxu0 0
      %552 = vmatmul.mubr.bf16.gmra.mrb[0].mxu0 %v514
      %v553 = vpop.f32.mrb[0].mxu0
      %v554 = vadd.f32 0.0, %v553
      %v555 = vpop.f32.mrb[0].mxu0
      %v556 = vpop.f32.mrb[0].mxu0
      %v557 = vpop.f32.mrb[0].mxu0
      %558 = vdwg.mxu0
      %v559 = vmul.f32 %v554, 0.25
      %v560 = vadd.f32 %v559, %v441
      %v561 = vsel %vm444, %v560, -inf
      %562 = vmax.xlane.f32.xlu0 %v561
      %v563 = vpop.xlane.xlu0 %562
      %v564 = vsub.f32 %v560, %v563
      %v565 = vmul.f32 %v564, 1.442695
      %v566 = vpow.pop %v565
      %v567 = vsel %vm444, %v566, 0.0
      %568 = vadd.xlane.f32.xlu0 %v567
      %v569 = vpop.xlane.xlu0 %568
      %v570 = vrcp.pop %v569
      %v571 = vmul.f32 %v566, %v570
      %v572 = vpack.c.bf16 %v571, %v571
      %573 = vrot.lane.b32.xlu0 %v385, 48
      %v574 = vpop.permute.xlu0 %573
      %v576 = vsel %vm444, %v572, 0
      %v579 = vsel %vm462, %v574, 0
      %581 = vmatprep.subr.bf16.mxu0 0
      %582 = vmatpush1.bf16.msra.mxu0 %v579
      %583 = vmatprep.subr.bf16.mxu0 0
      %584 = vmatpush1.bf16.msra.mxu0 0
      %585 = vmatprep.subr.bf16.mxu0 0
      %586 = vmatpush1.bf16.msra.mxu0 0
      %587 = vmatprep.subr.bf16.mxu0 0
      %588 = vmatpush1.bf16.msra.mxu0 0
      %589 = vmatprep.subr.bf16.mxu0 0
      %590 = vmatpush1.bf16.msra.mxu0 0
      %591 = vmatprep.subr.bf16.mxu0 0
      %592 = vmatpush1.bf16.msra.mxu0 0
      %593 = vmatprep.subr.bf16.mxu0 0
      %594 = vmatpush1.bf16.msra.mxu0 0
      %595 = vmatprep.subr.bf16.mxu0 0
      %596 = vmatpush1.bf16.msra.mxu0 0
      %597 = vmatprep.subr.bf16.mxu0 0
      %598 = vmatpush1.bf16.msra.mxu0 0
      %599 = vmatprep.subr.bf16.mxu0 0
      %600 = vmatpush1.bf16.msra.mxu0 0
      %601 = vmatprep.subr.bf16.mxu0 0
      %602 = vmatpush1.bf16.msra.mxu0 0
      %603 = vmatprep.subr.bf16.mxu0 0
      %604 = vmatpush1.bf16.msra.mxu0 0
      %605 = vmatprep.subr.bf16.mxu0 0
      %606 = vmatpush1.bf16.msra.mxu0 0
      %607 = vmatprep.subr.bf16.mxu0 0
      %608 = vmatpush1.bf16.msra.mxu0 0
      %609 = vmatprep.subr.bf16.mxu0 0
      %610 = vmatpush1.bf16.msra.mxu0 0
      %611 = vmatprep.subr.bf16.mxu0 0
      %612 = vmatpush1.bf16.msra.mxu0 0
      %613 = vmatprep.mubr.bf16.mxu0 0
      %614 = vmatmul.mubr.bf16.gmra.mrb[0].mxu0 %v576
      %v615 = vpop.f32.mrb[0].mxu0
      %v616 = vadd.f32 0.0, %v615
      %v617 = vpop.f32.mrb[0].mxu0
      %v618 = vpop.f32.mrb[0].mxu0
      %v619 = vpop.f32.mrb[0].mxu0
      %620 = vdwg.mxu0
      %v621 = vpack.c.bf16 %v616, %v616
      %v622 = vld [vmem:[%s4 + $0x8] sm:$0xf]
      %v623 = vld [vmem:[%s4 + $0xc] sm:$0xf]
      %v626 = vunpack.c.l.b16 %v622
      %v627 = vunpack.c.l.b16 %v623
      %v628 = vpack.c.b16 %v627, %v626
      %v631 = vsel %vm389, %v621, 0
      %633 = vmatprep.subr.bf16.mxu0 0
      %634 = vmatpush1.bf16.msra.mxu0 %v628
      %635 = vmatprep.subr.bf16.mxu0 0
      %636 = vmatpush1.bf16.msra.mxu0 0
      %637 = vmatprep.subr.bf16.mxu0 0
      %638 = vmatpush1.bf16.msra.mxu0 0
      %639 = vmatprep.subr.bf16.mxu0 0
      %640 = vmatpush1.bf16.msra.mxu0 0
      %641 = vmatprep.subr.bf16.mxu0 0
      %642 = vmatpush1.bf16.msra.mxu0 0
      %643 = vmatprep.subr.bf16.mxu0 0
      %644 = vmatpush1.bf16.msra.mxu0 0
      %645 = vmatprep.subr.bf16.mxu0 0
      %646 = vmatpush1.bf16.msra.mxu0 0
      %647 = vmatprep.subr.bf16.mxu0 0
      %648 = vmatpush1.bf16.msra.mxu0 0
      %649 = vmatprep.subr.bf16.mxu0 0
      %650 = vmatpush1.bf16.msra.mxu0 0
      %651 = vmatprep.subr.bf16.mxu0 0
      %652 = vmatpush1.bf16.msra.mxu0 0
      %653 = vmatprep.subr.bf16.mxu0 0
      %654 = vmatpush1.bf16.msra.mxu0 0
      %655 = vmatprep.subr.bf16.mxu0 0
      %656 = vmatpush1.bf16.msra.mxu0 0
      %657 = vmatprep.subr.bf16.mxu0 0
      %658 = vmatpush1.bf16.msra.mxu0 0
      %659 = vmatprep.subr.bf16.mxu0 0
      %660 = vmatpush1.bf16.msra.mxu0 0
      %661 = vmatprep.subr.bf16.mxu0 0
      %662 = vmatpush1.bf16.msra.mxu0 0
      %663 = vmatprep.subr.bf16.mxu0 0
      %664 = vmatpush1.bf16.msra.mxu0 0
      %665 = vmatprep.mubr.bf16.mxu0 0
      %666 = vmatmul.mubr.bf16.gmra.mrb[0].mxu0 %v631
      %v667 = vpop.f32.mrb[0].mxu0
      %v668 = vadd.f32 0.0, %v667
      %v669 = vpop.f32.mrb[0].mxu0
      %v670 = vpop.f32.mrb[0].mxu0
      %v671 = vpop.f32.mrb[0].mxu0
      %672 = vdwg.mxu0
      %v675 = vunpack.c.l.b16 %v507
      %v676 = vunpack.c.l.b16 %v508
      %v677 = vpack.c.b16 %v676, %v675
      %v680 = vsel %vm389, %v506, 0
      %682 = vmatprep.subr.bf16.mxu0 0
      %683 = vmatpush1.bf16.msra.mxu0 %v677
      %684 = vmatprep.subr.bf16.mxu0 0
      %685 = vmatpush1.bf16.msra.mxu0 0
      %686 = vmatprep.subr.bf16.mxu0 0
      %687 = vmatpush1.bf16.msra.mxu0 0
      %688 = vmatprep.subr.bf16.mxu0 0
      %689 = vmatpush1.bf16.msra.mxu0 0
      %690 = vmatprep.subr.bf16.mxu0 0
      %691 = vmatpush1.bf16.msra.mxu0 0
      %692 = vmatprep.subr.bf16.mxu0 0
      %693 = vmatpush1.bf16.msra.mxu0 0
      %694 = vmatprep.subr.bf16.mxu0 0
      %695 = vmatpush1.bf16.msra.mxu0 0
      %696 = vmatprep.subr.bf16.mxu0 0
      %697 = vmatpush1.bf16.msra.mxu0 0
      %698 = vmatprep.subr.bf16.mxu0 0
      %699 = vmatpush1.bf16.msra.mxu0 0
      %700 = vmatprep.subr.bf16.mxu0 0
      %701 = vmatpush1.bf16.msra.mxu0 0
      %702 = vmatprep.subr.bf16.mxu0 0
      %703 = vmatpush1.bf16.msra.mxu0 0
      %704 = vmatprep.subr.bf16.mxu0 0
      %705 = vmatpush1.bf16.msra.mxu0 0
      %706 = vmatprep.subr.bf16.mxu0 0
      %707 = vmatpush1.bf16.msra.mxu0 0
      %708 = vmatprep.subr.bf16.mxu0 0
      %709 = vmatpush1.bf16.msra.mxu0 0
      %710 = vmatprep.subr.bf16.mxu0 0
      %711 = vmatpush1.bf16.msra.mxu0 0
      %712 = vmatprep.subr.bf16.mxu0 0
      %713 = vmatpush1.bf16.msra.mxu0 0
      %714 = vmatprep.mubr.bf16.mxu0 0
      %715 = vmatmul.mubr.bf16.gmra.mrb[0].mxu0 %v680
      %v716 = vpop.f32.mrb[0].mxu0
      %v717 = vadd.f32 %v668, %v716
      %v718 = vpop.f32.mrb[0].mxu0
      %v719 = vpop.f32.mrb[0].mxu0
      %v720 = vpop.f32.mrb[0].mxu0
      %721 = vdwg.mxu0
      %v722 = vld [vmem:[%s5] sm:$0x1]
      %v724 = vlaneseq
      %v725 = vshrl.u32 %v724, 7
      %v726 = vsub.s32 0, %v725
      %v727 = vrot.slane %v722, %v726
      %v729 = vadd.f32 %v717, %v727
      %v730 = vunpack.c.l.bf16 %v316
      %v731 = vadd.f32 %v729, %v730
      %v732 = vsel %vm341, %v731, 0.0
      %733 = vadd.xlane.f32.xlu0 %v732
      %v734 = vpop.xlane.xlu0 %733
      %v735 = vrcp.pop 32.0
      %v736 = vmul.f32 %v734, %v735
      %v737 = vsub.f32 %v731, %v736
      %v738 = vmul.f32 %v737, %v737
      %v739 = vsel %vm341, %v738, 0.0
      %740 = vadd.xlane.f32.xlu0 %v739
      %v741 = vpop.xlane.xlu0 %740
      %v742 = vmul.f32 %v741, %v735
      %v743 = vadd.f32 %v742, 1e-12
      %v744 = vrsqrt.pop %v743
      %v745 = vmul.f32 %v737, %v744
      %v746 = vld [vmem:[%s6] sm:$0x1]
      %v748 = vlaneseq
      %v749 = vshrl.u32 %v748, 7
      %v750 = vsub.s32 0, %v749
      %v751 = vrot.slane %v746, %v750
      %v753 = vmul.f32 %v745, %v751
      %v754 = vld [vmem:[%s7] sm:$0x1]
      %v756 = vlaneseq
      %v757 = vshrl.u32 %v756, 7
      %v758 = vsub.s32 0, %v757
      %v759 = vrot.slane %v754, %v758
      %v761 = vadd.f32 %v753, %v759
      %v762 = vpack.c.bf16 %v761, %v761
      %vm763 = vcmask 257024
      %764 = vst.msk [vmem:[%s314] sm:$0xf] %vm763, %v762
      %p765 = scmp.lt.s32.totalorder %s19, 1
      %s766 = scalar_select %p765, %s19, 1
      %s767 = smul.addr %s766, 4
      %s768 = scalar_lea.vmem %s8, %s767
      // Predicated region
      $region53: #{ner_re_forward.8} parent=51 // pred_check
        %p769 = pneg %p215
      $region54: #{ner_re_forward.8} parent=51 // pred_check_branch
        %771 = sbr.rel (%p769) target = $region56
      $region55: #{ner_re_forward.8} parent=51 // pred_region
        _
      $region56: #{ner_re_forward.8} parent=51 // pred_fallthru
        _
    $region52: #{ner_re_forward.8} parent=5 // pred_fallthru
      _
    %p772 = scmp.le.s32.totalorder 2, %s14
    // Predicated region
    $region57: #{ner_re_forward.8} parent=5 // pred_check
      %p773 = pneg %p772
    $region58: #{ner_re_forward.8} parent=5 // pred_check_branch
      %775 = sbr.rel (%p773) target = $region60
    $region59: #{ner_re_forward.8} parent=5 // pred_region
      %s776 = ssub.s32 %s14, 2
      // Predicated region
      $region61: #{ner_re_forward.8} parent=59 // pred_check
        %p777 = pneg %p221
      $region62: #{ner_re_forward.8} parent=59 // pred_check_branch
        %779 = sbr.rel (%p777) target = $region64
      $region63: #{ner_re_forward.8} parent=59 // pred_region
        %p780 = scmp.lt.s32.totalorder %s20, 1
        %s781 = scalar_select %p780, %s20, 1
        %s782 = smul.addr %s781, 4
        %s783 = scalar_lea.vmem %s8, %s782
      $region64: #{ner_re_forward.8} parent=59 // pred_fallthru
        _
    $region60: #{ner_re_forward.8} parent=5 // pred_fallthru
      _
  $region6: #{ner_re_forward.8} parent=0 // loop_footer
    %s18 = sadd.s32 1, %s14
  $region7: #{ner_re_forward.8} parent=0 // loop_footer_branch
    %13 = sbr.rel target = $region3
  $region8: #{ner_re_forward.8} parent=0 // loop_exit
    _

// kernel: ner_re_forward.9
$region0: #{ner_re_forward.9}
  #allocation0 [shape = 'u32[]', space=smem, size = 0x4, offset = 0x4, fixed_abs, tag = 'smem constant byte address 0x4 - core index']
  #allocation1 [shape = 'u32[144,128]{1,0:T(1,128)}', space=vmem, size = 0x12000, scoped, tag = 'internal scratch']
  %s0 = inlined_call_operand.vmem [shape: bf16[16,32], index: 0, kind: input, shape index: {}]
  %s1 = inlined_call_operand.vmem [shape: bf16[32,64], index: 1, kind: input, shape index: {}]
  %s2 = inlined_call_operand.vmem [shape: f32[1,64], index: 2, kind: input, shape index: {}]
  %s3 = inlined_call_operand.vmem [shape: bf16[64,32], index: 3, kind: input, shape index: {}]
  %s4 = inlined_call_operand.vmem [shape: f32[1,32], index: 4, kind: input, shape index: {}]
  %s5 = inlined_call_operand.vmem [shape: f32[1,32], index: 5, kind: input, shape index: {}]
  %s6 = inlined_call_operand.vmem [shape: f32[1,32], index: 6, kind: input, shape index: {}]
  %s7 = inlined_call_operand.vmem [shape: bf16[16,32], index: 7, kind: output, shape index: {}]
  %s8 = sld [smem:[#allocation0]]
  $region38: #{ner_re_forward.9} parent=0
    _
  %s10 = ssub.s32 1, %s8
  %s11 = scalar_select 0, %s10, %s8
  // Predicated region
  $region2: #{ner_re_forward.9} parent=0 // pred_check
    _
  $region3: #{ner_re_forward.9} parent=0 // pred_check_branch
    %13 = sbr.rel (0) target = $region5
  $region4: #{ner_re_forward.9} parent=0 // pred_region
    _
  $region5: #{ner_re_forward.9} parent=0 // pred_fallthru
    _
  // Predicated region
  $region6: #{ner_re_forward.9} parent=0 // pred_check
    _
  $region7: #{ner_re_forward.9} parent=0 // pred_check_branch
    %15 = sbr.rel (0) target = $region9
  $region8: #{ner_re_forward.9} parent=0 // pred_region
    _
  $region9: #{ner_re_forward.9} parent=0 // pred_fallthru
    _
  // Predicated region
  $region10: #{ner_re_forward.9} parent=0 // pred_check
    _
  $region11: #{ner_re_forward.9} parent=0 // pred_check_branch
    %17 = sbr.rel (0) target = $region13
  $region12: #{ner_re_forward.9} parent=0 // pred_region
    _
  $region13: #{ner_re_forward.9} parent=0 // pred_fallthru
    _
  // Predicated region
  $region14: #{ner_re_forward.9} parent=0 // pred_check
    _
  $region15: #{ner_re_forward.9} parent=0 // pred_check_branch
    %19 = sbr.rel (0) target = $region17
  $region16: #{ner_re_forward.9} parent=0 // pred_region
    _
  $region17: #{ner_re_forward.9} parent=0 // pred_fallthru
    _
  // Predicated region
  $region18: #{ner_re_forward.9} parent=0 // pred_check
    _
  $region19: #{ner_re_forward.9} parent=0 // pred_check_branch
    %21 = sbr.rel (0) target = $region21
  $region20: #{ner_re_forward.9} parent=0 // pred_region
    _
  $region21: #{ner_re_forward.9} parent=0 // pred_fallthru
    _
  // Predicated region
  $region22: #{ner_re_forward.9} parent=0 // pred_check
    _
  $region23: #{ner_re_forward.9} parent=0 // pred_check_branch
    %23 = sbr.rel (0) target = $region25
  $region24: #{ner_re_forward.9} parent=0 // pred_region
    _
  $region25: #{ner_re_forward.9} parent=0 // pred_fallthru
    _
  // Predicated region
  $region26: #{ner_re_forward.9} parent=0 // pred_check
    _
  $region27: #{ner_re_forward.9} parent=0 // pred_check_branch
    %25 = sbr.rel (0) target = $region29
  $region28: #{ner_re_forward.9} parent=0 // pred_region
    _
  $region29: #{ner_re_forward.9} parent=0 // pred_fallthru
    _
  %v27 = vld [vmem:[%s0] sm:$0xf]
  %v28 = vld [vmem:[%s0 + $0x4] sm:$0xf]
  %v29 = vld [vmem:[%s1] sm:$0xf]
  %v30 = vld [vmem:[%s1 + $0x4] sm:$0xf]
  %v31 = vld [vmem:[%s1 + $0x8] sm:$0xf]
  %v32 = vld [vmem:[%s1 + $0xc] sm:$0xf]
  %v33 = vld [vmem:[%s2] sm:$0x1]
  %v35 = vlaneseq
  %v36 = vshrl.u32 %v35, 7
  %v37 = vsub.s32 0, %v36
  %v38 = vrot.slane %v33, %v37
  %v42 = vunpack.c.l.b16 %v27
  %v43 = vunpack.c.l.b16 %v28
  %v44 = vpack.c.b16 %v43, %v42
  %v49 = vunpack.c.l.b16 %v29
  %v50 = vunpack.c.l.b16 %v30
  %v51 = vunpack.c.l.b16 %v31
  %v52 = vunpack.c.l.b16 %v32
  %v53 = vpack.c.b16 %v50, %v49
  %v54 = vpack.c.b16 %v52, %v51
  %vm57 = vcmask 261120
  %v59 = vsel %vm57, %v44, 0
  %61 = vmatprep.subr.bf16.mxu0 0
  %62 = vmatpush1.bf16.msra.mxu0 %v53
  %63 = vmatprep.subr.bf16.mxu0 0
  %64 = vmatpush1.bf16.msra.mxu0 %v54
  %65 = vmatprep.subr.bf16.mxu0 0
  %66 = vmatpush1.bf16.msra.mxu0 0
  %67 = vmatprep.subr.bf16.mxu0 0
  %68 = vmatpush1.bf16.msra.mxu0 0
  %69 = vmatprep.subr.bf16.mxu0 0
  %70 = vmatpush1.bf16.msra.mxu0 0
  %71 = vmatprep.subr.bf16.mxu0 0
  %72 = vmatpush1.bf16.msra.mxu0 0
  %73 = vmatprep.subr.bf16.mxu0 0
  %74 = vmatpush1.bf16.msra.mxu0 0
  %75 = vmatprep.subr.bf16.mxu0 0
  %76 = vmatpush1.bf16.msra.mxu0 0
  %77 = vmatprep.subr.bf16.mxu0 0
  %78 = vmatpush1.bf16.msra.mxu0 0
  %79 = vmatprep.subr.bf16.mxu0 0
  %80 = vmatpush1.bf16.msra.mxu0 0
  %81 = vmatprep.subr.bf16.mxu0 0
  %82 = vmatpush1.bf16.msra.mxu0 0
  %83 = vmatprep.subr.bf16.mxu0 0
  %84 = vmatpush1.bf16.msra.mxu0 0
  %85 = vmatprep.subr.bf16.mxu0 0
  %86 = vmatpush1.bf16.msra.mxu0 0
  %87 = vmatprep.subr.bf16.mxu0 0
  %88 = vmatpush1.bf16.msra.mxu0 0
  %89 = vmatprep.subr.bf16.mxu0 0
  %90 = vmatpush1.bf16.msra.mxu0 0
  %91 = vmatprep.subr.bf16.mxu0 0
  %92 = vmatpush1.bf16.msra.mxu0 0
  %93 = vmatprep.mubr.bf16.mxu0 0
  %94 = vmatmul.mubr.bf16.gmra.mrb[0].mxu0 %v59
  %v95 = vpop.f32.mrb[0].mxu0
  %v96 = vadd.f32 %v38, %v95
  %v97 = vpop.f32.mrb[0].mxu0
  %v98 = vpop.f32.mrb[0].mxu0
  %v99 = vadd.f32 %v38, %v98
  %v100 = vpop.f32.mrb[0].mxu0
  %101 = vdwg.mxu0
  %v102 = vmul.f32 %v96, %v96
  %v103 = vmul.f32 %v99, %v99
  %v104 = vmul.f32 %v96, %v102
  %v105 = vmul.f32 %v99, %v103
  %v106 = vmul.f32 %v104, 0.044715
  %v107 = vmul.f32 %v105, 0.044715
  %v108 = vadd.f32 %v96, %v106
  %v109 = vadd.f32 %v99, %v107
  %v110 = vmul.f32 %v108, 0.7978846
  %v111 = vmul.f32 %v109, 0.7978846
  %v112 = vtanh.pop %v110
  %v113 = vtanh.pop %v111
  %v114 = vadd.f32 %v112, 1.0
  %v115 = vadd.f32 %v113, 1.0
  %v116 = vmul.f32 %v114, 0.5
  %v117 = vmul.f32 %v115, 0.5
  %v118 = vmul.f32 %v96, %v116
  %v119 = vmul.f32 %v99, %v117
  %v120 = vpack.c.bf16 %v119, %v118
  %v121 = vld [vmem:[%s3] sm:$0xf]
  %v122 = vld [vmem:[%s3 + $0x4] sm:$0xf]
  %v123 = vld [vmem:[%s3 + $0x8] sm:$0xf]
  %v124 = vld [vmem:[%s3 + $0xc] sm:$0xf]
  %v125 = vld [vmem:[%s3 + $0x10] sm:$0xf]
  %v126 = vld [vmem:[%s3 + $0x14] sm:$0xf]
  %v127 = vld [vmem:[%s3 + $0x18] sm:$0xf]
  %v128 = vld [vmem:[%s3 + $0x1c] sm:$0xf]
  %v129 = vld [vmem:[%s4] sm:$0x1]
  %v131 = vlaneseq
  %v132 = vshrl.u32 %v131, 7
  %v133 = vsub.s32 0, %v132
  %v134 = vrot.slane %v129, %v133
  %v144 = vunpack.c.l.b16 %v121
  %v145 = vunpack.c.l.b16 %v122
  %v146 = vunpack.c.l.b16 %v123
  %v147 = vunpack.c.l.b16 %v124
  %v148 = vunpack.c.l.b16 %v125
  %v149 = vunpack.c.l.b16 %v126
  %v150 = vunpack.c.l.b16 %v127
  %v151 = vunpack.c.l.b16 %v128
  %v152 = vpack.c.b16 %v145, %v144
  %v153 = vpack.c.b16 %v147, %v146
  %v154 = vpack.c.b16 %v149, %v148
  %v155 = vpack.c.b16 %v151, %v150
  %vm160 = vcmask 523264
  %v162 = vsel %vm160, %v120, 0
  %164 = vmatprep.subr.bf16.mxu0 0
  %165 = vmatpush1.bf16.msra.mxu0 %v152
  %166 = vmatprep.subr.bf16.mxu0 0
  %167 = vmatpush1.bf16.msra.mxu0 %v153
  %168 = vmatprep.subr.bf16.mxu0 0
  %169 = vmatpush1.bf16.msra.mxu0 %v154
  %170 = vmatprep.subr.bf16.mxu0 0
  %171 = vmatpush1.bf16.msra.mxu0 %v155
  %172 = vmatprep.subr.bf16.mxu0 0
  %173 = vmatpush1.bf16.msra.mxu0 0
  %174 = vmatprep.subr.bf16.mxu0 0
  %175 = vmatpush1.bf16.msra.mxu0 0
  %176 = vmatprep.subr.bf16.mxu0 0
  %177 = vmatpush1.bf16.msra.mxu0 0
  %178 = vmatprep.subr.bf16.mxu0 0
  %179 = vmatpush1.bf16.msra.mxu0 0
  %180 = vmatprep.subr.bf16.mxu0 0
  %181 = vmatpush1.bf16.msra.mxu0 0
  %182 = vmatprep.subr.bf16.mxu0 0
  %183 = vmatpush1.bf16.msra.mxu0 0
  %184 = vmatprep.subr.bf16.mxu0 0
  %185 = vmatpush1.bf16.msra.mxu0 0
  %186 = vmatprep.subr.bf16.mxu0 0
  %187 = vmatpush1.bf16.msra.mxu0 0
  %188 = vmatprep.subr.bf16.mxu0 0
  %189 = vmatpush1.bf16.msra.mxu0 0
  %190 = vmatprep.subr.bf16.mxu0 0
  %191 = vmatpush1.bf16.msra.mxu0 0
  %192 = vmatprep.subr.bf16.mxu0 0
  %193 = vmatpush1.bf16.msra.mxu0 0
  %194 = vmatprep.subr.bf16.mxu0 0
  %195 = vmatpush1.bf16.msra.mxu0 0
  %196 = vmatprep.mubr.bf16.mxu0 0
  %197 = vmatmul.mubr.bf16.gmra.mrb[0].mxu0 %v162
  %v198 = vpop.f32.mrb[0].mxu0
  %v199 = vadd.f32 %v134, %v198
  %v200 = vpop.f32.mrb[0].mxu0
  %v201 = vpop.f32.mrb[0].mxu0
  %v202 = vadd.f32 %v134, %v201
  %v203 = vpop.f32.mrb[0].mxu0
  %204 = vdwg.mxu0
  %v205 = vunpack.c.l.bf16 %v27
  %v206 = vunpack.c.l.bf16 %v28
  %v207 = vadd.f32 %v199, %v205
  %v208 = vadd.f32 %v202, %v206
  %v209 = vsel %vm57, %v207, 0.0
  %210 = vadd.xlane.f32.xlu0 %v209
  %v211 = vpop.xlane.xlu0 %210
  %v212 = vsel %vm57, %v208, 0.0
  %213 = vadd.xlane.f32.xlu0 %v212
  %v214 = vpop.xlane.xlu0 %213
  %v215 = vrcp.pop 32.0
  %v216 = vmul.f32 %v211, %v215
  %v217 = vmul.f32 %v214, %v215
  %v218 = vsub.f32 %v207, %v216
  %v219 = vsub.f32 %v208, %v217
  %v220 = vmul.f32 %v218, %v218
  %v221 = vmul.f32 %v219, %v219
  %v222 = vsel %vm57, %v220, 0.0
  %223 = vadd.xlane.f32.xlu0 %v222
  %v224 = vpop.xlane.xlu0 %223
  %v225 = vsel %vm57, %v221, 0.0
  %226 = vadd.xlane.f32.xlu0 %v225
  %v227 = vpop.xlane.xlu0 %226
  %v228 = vmul.f32 %v224, %v215
  %v229 = vmul.f32 %v227, %v215
  %v230 = vadd.f32 %v228, 1e-12
  %v231 = vadd.f32 %v229, 1e-12
  %v232 = vrsqrt.pop %v230
  %v233 = vrsqrt.pop %v231
  %v234 = vmul.f32 %v218, %v232
  %v235 = vmul.f32 %v219, %v233
  %v236 = vld [vmem:[%s5] sm:$0x1]
  %v238 = vlaneseq
  %v239 = vshrl.u32 %v238, 7
  %v240 = vsub.s32 0, %v239
  %v241 = vrot.slane %v236, %v240
  %v243 = vmul.f32 %v234, %v241
  %v244 = vmul.f32 %v235, %v241
  %v245 = vld [vmem:[%s6] sm:$0x1]
  %v247 = vlaneseq
  %v248 = vshrl.u32 %v247, 7
  %v249 = vsub.s32 0, %v248
  %v250 = vrot.slane %v245, %v249
  %v252 = vadd.f32 %v243, %v250
  %v253 = vadd.f32 %v244, %v250
  %v254 = vpack.c.bf16 %v253, %v252
  %v256 = vunpack.c.l.b16 %v254
  %v257 = vunpack.c.h.b16 %v254
  %v258 = vpack.c.b16 %v256, %v256
  %v259 = vpack.c.b16 %v257, %v257
  %vm262 = vcmask 257024
  %263 = vst.msk [vmem:[%s7] sm:$0xf] %vm262, %v258
  %264 = vst.msk [vmem:[%s7 + $0x4] sm:$0xf] %vm262, %v259
  // Predicated region
  $region30: #{ner_re_forward.9} parent=0 // pred_check
    _
  $region31: #{ner_re_forward.9} parent=0 // pred_check_branch
    %266 = sbr.rel (0) target = $region33
  $region32: #{ner_re_forward.9} parent=0 // pred_region
    _
  $region33: #{ner_re_forward.9} parent=0 // pred_fallthru
    _
  // Predicated region
  $region34: #{ner_re_forward.9} parent=0 // pred_check
    _
  $region35: #{ner_re_forward.9} parent=0 // pred_check_branch
    %268 = sbr.rel (0) target = $region37
  $region36: #{ner_re_forward.9} parent=0 // pred_region
    _
  $region37: #{ner_re_forward.9} parent=0 // pred_fallthru
    _

// kernel: ner_re_forward.13
$region0: #{ner_re_forward.13}
  #allocation0 [shape = 'u32[]', space=smem, size = 0x4, offset = 0x4, fixed_abs, tag = 'smem constant byte address 0x4 - core index']
  #allocation1 [shape = 'u32[144,128]{1,0:T(1,128)}', space=vmem, size = 0x12000, scoped, tag = 'internal scratch']
  %s0 = inlined_call_operand.vmem [shape: bf16[2,32], index: 0, kind: input, shape index: {}]
  %s1 = inlined_call_operand.vmem [shape: bf16[32,32], index: 1, kind: input, shape index: {}]
  %s2 = inlined_call_operand.vmem [shape: f32[1,32], index: 2, kind: input, shape index: {}]
  %s3 = inlined_call_operand.vmem [shape: bf16[32,128], index: 3, kind: input, shape index: {}]
  %s4 = inlined_call_operand.vmem [shape: f32[1,128], index: 4, kind: input, shape index: {}]
  %s5 = inlined_call_operand.hbm [shape: f32[2,128], index: 5, kind: output, shape index: {}]
  %s6 = sld [smem:[#allocation0]]
  $region30: #{ner_re_forward.13} parent=0
    _
  %s8 = ssub.s32 1, %s6
  %s9 = scalar_select 0, %s8, %s6
  $region1: #{ner_re_forward.13} parent=0
    #allocation2 [shape = 'u8[1024]{0}', space=vmem, size = 0x400, scoped, tag = 'output window, operand 0, single buffered']
    #allocation3 [shape = 's32[1]{0}', space=sflag, size = 0x4, scoped, tag = 'scoped memory for ner_re_forward.13']
    %10 = vsyncpa [#allocation3], 0
    // Predicated region
    $region2: #{ner_re_forward.13} parent=1 // pred_check
      _
    $region3: #{ner_re_forward.13} parent=1 // pred_check_branch
      %12 = sbr.rel (0) target = $region5
    $region4: #{ner_re_forward.13} parent=1 // pred_region
      _
    $region5: #{ner_re_forward.13} parent=1 // pred_fallthru
      _
    // Predicated region
    $region6: #{ner_re_forward.13} parent=1 // pred_check
      _
    $region7: #{ner_re_forward.13} parent=1 // pred_check_branch
      %14 = sbr.rel (0) target = $region9
    $region8: #{ner_re_forward.13} parent=1 // pred_region
      _
    $region9: #{ner_re_forward.13} parent=1 // pred_fallthru
      _
    // Predicated region
    $region10: #{ner_re_forward.13} parent=1 // pred_check
      _
    $region11: #{ner_re_forward.13} parent=1 // pred_check_branch
      %16 = sbr.rel (0) target = $region13
    $region12: #{ner_re_forward.13} parent=1 // pred_region
      _
    $region13: #{ner_re_forward.13} parent=1 // pred_fallthru
      _
    // Predicated region
    $region14: #{ner_re_forward.13} parent=1 // pred_check
      _
    $region15: #{ner_re_forward.13} parent=1 // pred_check_branch
      %18 = sbr.rel (0) target = $region17
    $region16: #{ner_re_forward.13} parent=1 // pred_region
      _
    $region17: #{ner_re_forward.13} parent=1 // pred_fallthru
      _
    // Predicated region
    $region18: #{ner_re_forward.13} parent=1 // pred_check
      _
    $region19: #{ner_re_forward.13} parent=1 // pred_check_branch
      %20 = sbr.rel (0) target = $region21
    $region20: #{ner_re_forward.13} parent=1 // pred_region
      _
    $region21: #{ner_re_forward.13} parent=1 // pred_fallthru
      _
    %v22 = vld [vmem:[%s0] sm:$0x1]
    %v23 = vld [vmem:[%s1] sm:$0xf]
    %v24 = vld [vmem:[%s1 + $0x4] sm:$0xf]
    %v25 = vld [vmem:[%s1 + $0x8] sm:$0xf]
    %v26 = vld [vmem:[%s1 + $0xc] sm:$0xf]
    %v27 = vld [vmem:[%s2] sm:$0x1]
    %v29 = vlaneseq
    %v30 = vshrl.u32 %v29, 7
    %v31 = vsub.s32 0, %v30
    %v32 = vrot.slane %v27, %v31
    %v38 = vunpack.c.l.b16 %v23
    %v39 = vunpack.c.l.b16 %v24
    %v40 = vunpack.c.l.b16 %v25
    %v41 = vunpack.c.l.b16 %v26
    %v42 = vpack.c.b16 %v39, %v38
    %v43 = vpack.c.b16 %v41, %v40
    %vm46 = vcmask 261120
    %v48 = vsel %vm46, %v22, 0
    %50 = vmatprep.subr.bf16.mxu0 0
    %51 = vmatpush1.bf16.msra.mxu0 %v42
    %52 = vmatprep.subr.bf16.mxu0 0
    %53 = vmatpush1.bf16.msra.mxu0 %v43
    %54 = vmatprep.subr.bf16.mxu0 0
    %55 = vmatpush1.bf16.msra.mxu0 0
    %56 = vmatprep.subr.bf16.mxu0 0
    %57 = vmatpush1.bf16.msra.mxu0 0
    %58 = vmatprep.subr.bf16.mxu0 0
    %59 = vmatpush1.bf16.msra.mxu0 0
    %60 = vmatprep.subr.bf16.mxu0 0
    %61 = vmatpush1.bf16.msra.mxu0 0
    %62 = vmatprep.subr.bf16.mxu0 0
    %63 = vmatpush1.bf16.msra.mxu0 0
    %64 = vmatprep.subr.bf16.mxu0 0
    %65 = vmatpush1.bf16.msra.mxu0 0
    %66 = vmatprep.subr.bf16.mxu0 0
    %67 = vmatpush1.bf16.msra.mxu0 0
    %68 = vmatprep.subr.bf16.mxu0 0
    %69 = vmatpush1.bf16.msra.mxu0 0
    %70 = vmatprep.subr.bf16.mxu0 0
    %71 = vmatpush1.bf16.msra.mxu0 0
    %72 = vmatprep.subr.bf16.mxu0 0
    %73 = vmatpush1.bf16.msra.mxu0 0
    %74 = vmatprep.subr.bf16.mxu0 0
    %75 = vmatpush1.bf16.msra.mxu0 0
    %76 = vmatprep.subr.bf16.mxu0 0
    %77 = vmatpush1.bf16.msra.mxu0 0
    %78 = vmatprep.subr.bf16.mxu0 0
    %79 = vmatpush1.bf16.msra.mxu0 0
    %80 = vmatprep.subr.bf16.mxu0 0
    %81 = vmatpush1.bf16.msra.mxu0 0
    %82 = vmatprep.mubr.bf16.mxu0 0
    %83 = vmatmul.mubr.bf16.gmra.mrb[0].mxu0 %v48
    %v84 = vpop.f32.mrb[0].mxu0
    %v85 = vadd.f32 %v32, %v84
    %v86 = vpop.f32.mrb[0].mxu0
    %v87 = vpop.f32.mrb[0].mxu0
    %v88 = vpop.f32.mrb[0].mxu0
    %89 = vdwg.mxu0
    %v90 = vtanh.pop %v85
    %v91 = vpack.c.bf16 %v90, %v90
    %v92 = vld [vmem:[%s3] sm:$0xf]
    %v93 = vld [vmem:[%s3 + $0x4] sm:$0xf]
    %v94 = vld [vmem:[%s3 + $0x8] sm:$0xf]
    %v95 = vld [vmem:[%s3 + $0xc] sm:$0xf]
    %v96 = vld [vmem:[%s4] sm:$0x1]
    %v98 = vlaneseq
    %v99 = vshrl.u32 %v98, 7
    %v100 = vsub.s32 0, %v99
    %v101 = vrot.slane %v96, %v100
    %v107 = vunpack.c.l.b16 %v92
    %v108 = vunpack.c.l.b16 %v93
    %v109 = vunpack.c.l.b16 %v94
    %v110 = vunpack.c.l.b16 %v95
    %v111 = vpack.c.b16 %v108, %v107
    %v112 = vpack.c.b16 %v110, %v109
    %v116 = vsel %vm46, %v91, 0
    %118 = vmatprep.subr.bf16.mxu0 0
    %119 = vmatpush1.bf16.msra.mxu0 %v111
    %120 = vmatprep.subr.bf16.mxu0 0
    %121 = vmatpush1.bf16.msra.mxu0 %v112
    %122 = vmatprep.subr.bf16.mxu0 0
    %123 = vmatpush1.bf16.msra.mxu0 0
    %124 = vmatprep.subr.bf16.mxu0 0
    %125 = vmatpush1.bf16.msra.mxu0 0
    %126 = vmatprep.subr.bf16.mxu0 0
    %127 = vmatpush1.bf16.msra.mxu0 0
    %128 = vmatprep.subr.bf16.mxu0 0
    %129 = vmatpush1.bf16.msra.mxu0 0
    %130 = vmatprep.subr.bf16.mxu0 0
    %131 = vmatpush1.bf16.msra.mxu0 0
    %132 = vmatprep.subr.bf16.mxu0 0
    %133 = vmatpush1.bf16.msra.mxu0 0
    %134 = vmatprep.subr.bf16.mxu0 0
    %135 = vmatpush1.bf16.msra.mxu0 0
    %136 = vmatprep.subr.bf16.mxu0 0
    %137 = vmatpush1.bf16.msra.mxu0 0
    %138 = vmatprep.subr.bf16.mxu0 0
    %139 = vmatpush1.bf16.msra.mxu0 0
    %140 = vmatprep.subr.bf16.mxu0 0
    %141 = vmatpush1.bf16.msra.mxu0 0
    %142 = vmatprep.subr.bf16.mxu0 0
    %143 = vmatpush1.bf16.msra.mxu0 0
    %144 = vmatprep.subr.bf16.mxu0 0
    %145 = vmatpush1.bf16.msra.mxu0 0
    %146 = vmatprep.subr.bf16.mxu0 0
    %147 = vmatpush1.bf16.msra.mxu0 0
    %148 = vmatprep.subr.bf16.mxu0 0
    %149 = vmatpush1.bf16.msra.mxu0 0
    %150 = vmatprep.mubr.bf16.mxu0 0
    %151 = vmatmul.mubr.bf16.gmra.mrb[0].mxu0 %v116
    %v152 = vpop.f32.mrb[0].mxu0
    %v153 = vadd.f32 %v101, %v152
    %v154 = vpop.f32.mrb[0].mxu0
    %v155 = vpop.f32.mrb[0].mxu0
    %v156 = vpop.f32.mrb[0].mxu0
    %157 = vdwg.mxu0
    %158 = vst [vmem:[#allocation2] sm:$0x3] %v153
    // Predicated region
    $region22: #{ner_re_forward.13} parent=1 // pred_check
      _
    $region23: #{ner_re_forward.13} parent=1 // pred_check_branch
      %160 = sbr.rel (0) target = $region25
    $region24: #{ner_re_forward.13} parent=1 // pred_region
      %s162 = ssub.s32 32, 32
      %163 = vsyncadd [#allocation3], %s162
      %s165 = sshll.u32 [#allocation2], 4
      %s166 = int_to_ptr.vmem [resolvable:$true] %s165
      %168 = dma.vmem_to_hbm [thread:$0]  %s166, 32, %s5, [#allocation3]
    $region25: #{ner_re_forward.13} parent=1 // pred_fallthru
      _
    // Predicated region
    $region26: #{ner_re_forward.13} parent=1 // pred_check
      _
    $region27: #{ner_re_forward.13} parent=1 // pred_check_branch
      %170 = sbr.rel (0) target = $region29
    $region28: #{ner_re_forward.13} parent=1 // pred_region
      %171 = dma.done [#allocation3], 32
    $region29: #{ner_re_forward.13} parent=1 // pred_fallthru
      _
    %172 = vsyncpa [#allocation3], 1

</llo_original>
